<compile_context>
chip_gen: v5e
topology: v5e:2x2
jax: 0.10.0
libtpu: 0.0.40
codegen_flags: <defaults>
</compile_context>

<pallas_src>
import functools

import jax
import jax.numpy as jnp
from jax.experimental import pallas as pl
from jax.experimental.pallas import tpu as pltpu


def _round_up(n, m):
    return ((n + m - 1) // m) * m


# ----------------------------------- fused kernel ------------------------------------------

def lstm_decoder_kernel(x_ref, h0_ref, c0_ref,
                        w_emb_ref, b_emb_ref,
                        w_gx_ref, w_gh_ref, b_g_ref,
                        w_out_ref, b_out_ref,
                        pred_ref, h_fin_ref, c_fin_ref,
                        h_scr, c_scr, *, hidden_pad):
    """One decode step per grid point t; h/c carried across t in VMEM scratch."""
    bf16 = jnp.bfloat16
    Hp = hidden_pad
    t = pl.program_id(0)

    @pl.when(t == 0)
    def _():
        h_scr[...] = h0_ref[...]
        c_scr[...] = c0_ref[...]

    x = x_ref[0]            # (Bp, Op) f32
    h = h_scr[...]          # (Bp, Hp) f32
    c = c_scr[...]          # (Bp, Hp) f32

    # embedding = relu(Linear(x)); Dropout(p=0) is identity.
    emb = jnp.dot(x.astype(bf16), w_emb_ref[...],
                  preferred_element_type=jnp.float32) + b_emb_ref[...]
    emb = jnp.maximum(emb, 0.0)                                   # (Bp, Ep) f32

    # Gates as two accumulating dots (no concat copy): emb @ W_ih^T + h @ W_hh^T + (b_ih+b_hh).
    gates = (jnp.dot(emb.astype(bf16), w_gx_ref[...], preferred_element_type=jnp.float32)
             + jnp.dot(h.astype(bf16), w_gh_ref[...], preferred_element_type=jnp.float32)
             + b_g_ref[...])                                      # (Bp, 4*Hp) f32

    # Columns pre-packed as [i, f, o, g]: one sigmoid slab + one tanh block (lane-aligned).
    sig = jax.nn.sigmoid(gates[:, :3 * Hp])
    i_g = sig[:, 0 * Hp:1 * Hp]
    f_g = sig[:, 1 * Hp:2 * Hp]
    o_g = sig[:, 2 * Hp:3 * Hp]
    g_g = jnp.tanh(gates[:, 3 * Hp:4 * Hp])

    c_new = f_g * c + i_g * g_g
    h_new = o_g * jnp.tanh(c_new)

    # prediction = Linear(h_new)
    pred = jnp.dot(h_new.astype(bf16), w_out_ref[...],
                   preferred_element_type=jnp.float32) + b_out_ref[...]

    pred_ref[0] = pred.astype(pred_ref.dtype)
    h_scr[...] = h_new
    c_scr[...] = c_new
    h_fin_ref[...] = h_new     # constant-index output block: resident, written back at the end
    c_fin_ref[...] = c_new


# ----------------------------------- weight prep -------------------------------------------

def prepare_params(params, compute_dtype=jnp.bfloat16):
    """One-time prep: transpose, pad lanes to 128, split gate weights (x / h), reorder gate
    columns to [i, f, o, g], pre-sum biases, cast matmul weights to bf16."""
    E, O = params["emb_w"].shape
    H = params["w_hh"].shape[1]
    Op, Ep, Hp = _round_up(O, 128), _round_up(E, 128), _round_up(H, 128)

    w_emb = jnp.zeros((Op, Ep), jnp.float32).at[:O, :E].set(params["emb_w"].T)
    b_emb = jnp.zeros((1, Ep), jnp.float32).at[0, :E].set(params["emb_b"])

    w_ih_t = params["w_ih"].T                   # (E, 4H), PyTorch gate order [i, f, g, o]
    w_hh_t = params["w_hh"].T                   # (H, 4H)
    b_sum = params["b_ih"] + params["b_hh"]     # (4H,)

    # Kernel gate order [i, f, o, g] -> source gate indices.
    src_order = (0, 1, 3, 2)
    w_gx = jnp.zeros((Ep, 4 * Hp), jnp.float32)
    w_gh = jnp.zeros((Hp, 4 * Hp), jnp.float32)
    b_g = jnp.zeros((1, 4 * Hp), jnp.float32)
    for dst, src in enumerate(src_order):
        w_gx = w_gx.at[:E, dst * Hp:dst * Hp + H].set(w_ih_t[:, src * H:(src + 1) * H])
        w_gh = w_gh.at[:H, dst * Hp:dst * Hp + H].set(w_hh_t[:, src * H:(src + 1) * H])
        b_g = b_g.at[0, dst * Hp:dst * Hp + H].set(b_sum[src * H:(src + 1) * H])

    w_out = jnp.zeros((Hp, Op), jnp.float32).at[:H, :O].set(params["out_w"].T)
    b_out = jnp.zeros((1, Op), jnp.float32).at[0, :O].set(params["out_b"])

    return {
        "w_emb": w_emb.astype(compute_dtype), "b_emb": b_emb,
        "w_gx": w_gx.astype(compute_dtype), "w_gh": w_gh.astype(compute_dtype), "b_g": b_g,
        "w_out": w_out.astype(compute_dtype), "b_out": b_out,
    }


# ----------------------------------- wrappers -----------------------------------------------

def _vmem_limit_bytes(Bp, Op, Ep, Hp):
    f32, bf16 = 4, 2
    step_blocks = 2 * Bp * Op * f32                     # x block + pred block
    state_blocks = 4 * Bp * Hp * f32                    # h0, c0, h_final, c_final
    weights = (bf16 * (Op * Ep + Ep * 4 * Hp + Hp * 4 * Hp + Hp * Op)
               + f32 * (Ep + 4 * Hp + Op))
    scratch = 2 * Bp * Hp * f32
    est = 2 * (step_blocks + state_blocks + weights) + scratch + (4 << 20)
    # Cap at v7x physical VMEM (64 MiB); floor keeps headroom above tiny toy estimates.
    return int(min(64 << 20, max(16 << 20, est)))


def _cost_estimate(T, Bp, Op, Ep, Hp):
    flops = 2 * T * Bp * (Op * Ep + (Ep + Hp) * 4 * Hp + Hp * Op)
    transcendentals = T * Bp * 5 * Hp                   # 3 sigmoid + 2 tanh per hidden element
    weight_bytes = (2 * (Op * Ep + Ep * 4 * Hp + Hp * 4 * Hp + Hp * Op)
                    + 4 * (Ep + 4 * Hp + Op))
    bytes_accessed = weight_bytes + 2 * T * Bp * Op * 4 + 4 * Bp * Hp * 4
    return pl.CostEstimate(flops=flops, transcendentals=transcendentals,
                           bytes_accessed=bytes_accessed)


def _decode_padded(prepped, x_pad, h_pad, c_pad):
    """x_pad: (T, Bp, Op), h_pad/c_pad: (Bp, Hp); all lane/sublane padded."""
    T, Bp, Op = x_pad.shape
    Hp = h_pad.shape[1]
    Ep = prepped["w_emb"].shape[1]

    kernel = functools.partial(lstm_decoder_kernel, hidden_pad=Hp)
    weight_names = ("w_emb", "b_emb", "w_gx", "w_gh", "b_g", "w_out", "b_out")
    # Constant index_map -> weights are DMA'd once and stay VMEM-resident across the time grid.
    weight_specs = [pl.BlockSpec(prepped[n].shape, lambda t: (0, 0)) for n in weight_names]

    in_specs = [
        pl.BlockSpec((1, Bp, Op), lambda t: (t, 0, 0)),   # x[t]
        pl.BlockSpec((Bp, Hp), lambda t: (0, 0)),         # h0 (read at t==0 only)
        pl.BlockSpec((Bp, Hp), lambda t: (0, 0)),         # c0 (read at t==0 only)
    ] + weight_specs
    out_specs = (
        pl.BlockSpec((1, Bp, Op), lambda t: (t, 0, 0)),   # pred[t]
        pl.BlockSpec((Bp, Hp), lambda t: (0, 0)),         # h_final (resident accumulator)
        pl.BlockSpec((Bp, Hp), lambda t: (0, 0)),         # c_final (resident accumulator)
    )

    return pl.pallas_call(
        kernel,
        grid=(T,),
        out_shape=(jax.ShapeDtypeStruct((T, Bp, Op), jnp.float32),
                   jax.ShapeDtypeStruct((Bp, Hp), jnp.float32),
                   jax.ShapeDtypeStruct((Bp, Hp), jnp.float32)),
        in_specs=in_specs,
        out_specs=out_specs,
        scratch_shapes=[pltpu.VMEM((Bp, Hp), jnp.float32),   # carried h
                        pltpu.VMEM((Bp, Hp), jnp.float32)],  # carried c
        compiler_params=pltpu.CompilerParams(
            dimension_semantics=("arbitrary",),               # sequential: state carry over t
            vmem_limit_bytes=_vmem_limit_bytes(Bp, Op, Ep, Hp)),
        cost_estimate=_cost_estimate(T, Bp, Op, Ep, Hp),
    )(x_pad, h_pad, c_pad, *[prepped[n] for n in weight_names])


@jax.jit
def lstm_decoder_decode(prepped, x_seq, ht, ct):
    """Fused multi-step decode.  x_seq: (T, B, O), ht/ct: (1, B, H)
    -> (preds (T, B, O), ht_new (1, B, H), ct_new (1, B, H)).
    Pads once before the fused grid, slices once after it."""
    T, B, O = x_seq.shape
    H = ht.shape[-1]
    Hp = prepped["w_gh"].shape[0]
    Op = prepped["w_out"].shape[1]
    Bp = _round_up(B, 8)

    # Padded state lanes stay exactly 0 through the LSTM update (f*0 + i*tanh(0) = 0), so
    # chaining padded state across the fused time grid is correct.
    x_pad = jnp.pad(x_seq, ((0, 0), (0, Bp - B), (0, Op - O)))
    h_pad = jnp.pad(ht[0], ((0, Bp - B), (0, Hp - H)))
    c_pad = jnp.pad(ct[0], ((0, Bp - B), (0, Hp - H)))

    pred_pad, h_fin, c_fin = _decode_padded(prepped, x_pad, h_pad, c_pad)

    preds = pred_pad[:, :B, :O]
    return preds, h_fin[:B, :H][None], c_fin[:B, :H][None]


@jax.jit
def lstm_decoder_forward(prepped, x, ht, ct):
    """Matches the PyTorch module forward (single step): returns prediction only."""
    preds, _, _ = lstm_decoder_decode(prepped, x[None], ht, ct)
    return preds[0]


# ----------------------------- references (validation) ------------------------------------

def _step_reference_f32(params, x, h, c):
    emb = jnp.maximum(x @ params["emb_w"].T + params["emb_b"], 0.0)
    gates = emb @ params["w_ih"].T + params["b_ih"] + h @ params["w_hh"].T + params["b_hh"]
    H = params["w_hh"].shape[1]
    i_g = jax.nn.sigmoid(gates[:, 0 * H:1 * H])
    f_g = jax.nn.sigmoid(gates[:, 1 * H:2 * H])
    g_g = jnp.tanh(gates[:, 2 * H:3 * H])
    o_g = jax.nn.sigmoid(gates[:, 3 * H:4 * H])
    c_new = f_g * c + i_g * g_g
    h_new = o_g * jnp.tanh(c_new)
    pred = h_new @ params["out_w"].T + params["out_b"]
    return pred, h_new, c_new


def _step_reference_mixed(params, x, h, c):
    """Same bf16-input / f32-accumulate matmul policy as the kernel."""
    bf16 = jnp.bfloat16
    emb = jnp.dot(x.astype(bf16), params["emb_w"].T.astype(bf16),
                  preferred_element_type=jnp.float32) + params["emb_b"]
    emb = jnp.maximum(emb, 0.0)
    gates = (jnp.dot(emb.astype(bf16), params["w_ih"].T.astype(bf16),
                     preferred_element_type=jnp.float32)
             + jnp.dot(h.astype(bf16), params["w_hh"].T.astype(bf16),
                       preferred_element_type=jnp.float32)
             + params["b_ih"] + params["b_hh"])
    H = params["w_hh"].shape[1]
    i_g = jax.nn.sigmoid(gates[:, 0 * H:1 * H])
    f_g = jax.nn.sigmoid(gates[:, 1 * H:2 * H])
    g_g = jnp.tanh(gates[:, 2 * H:3 * H])
    o_g = jax.nn.sigmoid(gates[:, 3 * H:4 * H])
    c_new = f_g * c + i_g * g_g
    h_new = o_g * jnp.tanh(c_new)
    pred = jnp.dot(h_new.astype(bf16), params["out_w"].T.astype(bf16),
                   preferred_element_type=jnp.float32) + params["out_b"]
    return pred, h_new, c_new


def _decode_reference(params, x_seq, ht, ct, step_fn):
    h, c = ht[0], ct[0]
    preds = []
    for t in range(x_seq.shape[0]):
        p, h, c = step_fn(params, x_seq[t], h, c)
        preds.append(p)
    return jnp.stack(preds), h, c


if __name__ == "__main__":
    B, O, E, H, L, T = 2, 16, 32, 32, 1, 4   # batch, output_size, embedding, hidden, layers, steps
    key = jax.random.PRNGKey(0)
    ks = jax.random.split(key, 12)

    def u(k, shape, fan_in):
        bound = 1.0 / jnp.sqrt(jnp.float32(fan_in))
        return jax.random.uniform(k, shape, jnp.float32, -bound, bound)

    # Deterministic, PyTorch-shaped parameters.
    params = {
        "emb_w": u(ks[0], (E, O), O),        # nn.Linear(output_size, embedding_size)
        "emb_b": u(ks[1], (E,), O),
        "w_ih": u(ks[2], (4 * H, E), H),     # nn.LSTM weight_ih_l0
        "w_hh": u(ks[3], (4 * H, H), H),     # nn.LSTM weight_hh_l0
        "b_ih": u(ks[4], (4 * H,), H),
        "b_hh": u(ks[5], (4 * H,), H),
        "out_w": u(ks[6], (O, H), H),        # nn.Linear(hidden_size, output_size)
        "out_b": u(ks[7], (O,), H),
    }

    x_seq = jax.random.normal(ks[8], (T, B, O), jnp.float32)
    ht = jax.random.normal(ks[9], (L, B, H), jnp.float32)
    ct = jax.random.normal(ks[10], (L, B, H), jnp.float32)

    prepped = prepare_params(params)     # one-time weight prep (hoisted out of the decode path)

    # ---- fused multi-step decode (one pallas_call, weights VMEM-resident, scratch-carried h/c)
    preds, ht_new, ct_new = lstm_decoder_decode(prepped, x_seq, ht, ct)
    preds = jax.block_until_ready(preds)
    assert preds.shape == (T, B, O), preds.shape
    assert ht_new.shape == (L, B, H) and ct_new.shape == (L, B, H)

    ref_preds_m, ref_h_m, ref_c_m = _decode_reference(params, x_seq, ht, ct, _step_reference_mixed)
    ref_preds_f, ref_h_f, ref_c_f = _decode_reference(params, x_seq, ht, ct, _step_reference_f32)

    # Tight check vs. a reference using the same bf16-matmul / f32-accumulate policy.
    assert jnp.max(jnp.abs(preds - ref_preds_m)) < 2e-2, float(jnp.max(jnp.abs(preds - ref_preds_m)))
    assert jnp.max(jnp.abs(ht_new[0] - ref_h_m)) < 2e-2, float(jnp.max(jnp.abs(ht_new[0] - ref_h_m)))
    assert jnp.max(jnp.abs(ct_new[0] - ref_c_m)) < 2e-2, float(jnp.max(jnp.abs(ct_new[0] - ref_c_m)))
    # Looser sanity check vs. the pure-f32 PyTorch-semantics reference (bf16 matmul inputs).
    assert jnp.max(jnp.abs(preds - ref_preds_f)) < 2e-1, float(jnp.max(jnp.abs(preds - ref_preds_f)))

    # ---- single-step module forward (T=1 case of the fused kernel)
    pred0 = jax.block_until_ready(lstm_decoder_forward(prepped, x_seq[0], ht, ct))
    assert pred0.shape == (B, O), pred0.shape
    ref_pred0, _, _ = _step_reference_f32(params, x_seq[0], ht[0], ct[0])
    assert jnp.max(jnp.abs(pred0 - ref_pred0)) < 1e-1, float(jnp.max(jnp.abs(pred0 - ref_pred0)))

    print("KERNEL_OK")
</pallas_src>

<mosaic_0001>
module attributes {stable_mosaic.version = 11 : i64} {
  func.func @lstm_decoder_kernel(%arg0: i32, %arg1: memref<1x8x128xf32, #tpu.memory_space<vmem>>, %arg2: memref<8x128xf32, #tpu.memory_space<vmem>>, %arg3: memref<8x128xf32, #tpu.memory_space<vmem>>, %arg4: memref<128x128xbf16, #tpu.memory_space<vmem>>, %arg5: memref<1x128xf32, #tpu.memory_space<vmem>>, %arg6: memref<128x512xbf16, #tpu.memory_space<vmem>>, %arg7: memref<128x512xbf16, #tpu.memory_space<vmem>>, %arg8: memref<1x512xf32, #tpu.memory_space<vmem>>, %arg9: memref<128x128xbf16, #tpu.memory_space<vmem>>, %arg10: memref<1x128xf32, #tpu.memory_space<vmem>>, %arg11: memref<1x8x128xf32, #tpu.memory_space<vmem>>, %arg12: memref<8x128xf32, #tpu.memory_space<vmem>>, %arg13: memref<8x128xf32, #tpu.memory_space<vmem>>, %arg14: memref<8x128xf32, #tpu.memory_space<vmem>>, %arg15: memref<8x128xf32, #tpu.memory_space<vmem>>) attributes {dimension_semantics = [#tpu.dimension_semantics<arbitrary>], iteration_bounds = array<i64: 4>, scalar_prefetch = 0 : i64, scratch_operands = 2 : i64, tpu.core_type = #tpu.core_type<tc>, window_params = [{transform_indices = @transform_0, window_bounds = array<i64: 1, 8, 128>}, {pipeline_mode = #tpu.pipeline_mode<synchronous>, transform_indices = @transform_1, window_bounds = array<i64: 8, 128>}, {pipeline_mode = #tpu.pipeline_mode<synchronous>, transform_indices = @transform_2, window_bounds = array<i64: 8, 128>}, {pipeline_mode = #tpu.pipeline_mode<synchronous>, transform_indices = @transform_3, window_bounds = array<i64: 128, 128>}, {pipeline_mode = #tpu.pipeline_mode<synchronous>, transform_indices = @transform_4, window_bounds = array<i64: 1, 128>}, {pipeline_mode = #tpu.pipeline_mode<synchronous>, transform_indices = @transform_5, window_bounds = array<i64: 128, 512>}, {pipeline_mode = #tpu.pipeline_mode<synchronous>, transform_indices = @transform_6, window_bounds = array<i64: 128, 512>}, {pipeline_mode = #tpu.pipeline_mode<synchronous>, transform_indices = @transform_7, window_bounds = array<i64: 1, 512>}, {pipeline_mode = #tpu.pipeline_mode<synchronous>, transform_indices = @transform_8, window_bounds = array<i64: 128, 128>}, {pipeline_mode = #tpu.pipeline_mode<synchronous>, transform_indices = @transform_9, window_bounds = array<i64: 1, 128>}, {transform_indices = @transform_10, window_bounds = array<i64: 1, 8, 128>}, {pipeline_mode = #tpu.pipeline_mode<synchronous>, transform_indices = @transform_11, window_bounds = array<i64: 8, 128>}, {pipeline_mode = #tpu.pipeline_mode<synchronous>, transform_indices = @transform_12, window_bounds = array<i64: 8, 128>}]} {
    %c0_i32 = arith.constant 0 : i32
    %0 = arith.cmpi eq, %arg0, %c0_i32 : i32
    %1 = arith.extui %0 : i1 to i32
    %c0_i32_0 = arith.constant 0 : i32
    %2 = arith.cmpi ne, %1, %c0_i32_0 : i32
    scf.if %2 {
      %c0_37 = arith.constant 0 : index
      %c0_38 = arith.constant 0 : index
      %54 = vector.load %arg2[%c0_37, %c0_38] : memref<8x128xf32, #tpu.memory_space<vmem>>, vector<8x128xf32>
      %c0_39 = arith.constant 0 : index
      %c0_40 = arith.constant 0 : index
      %55 = vector.load %arg14[%c0_39, %c0_40] : memref<8x128xf32, #tpu.memory_space<vmem>>, vector<8x128xf32>
      tpu.vector_store %arg14[%c0_39, %c0_40], %54 {strides = array<i32>} : memref<8x128xf32, #tpu.memory_space<vmem>>, vector<8x128xf32>,
      %c0_41 = arith.constant 0 : index
      %c0_42 = arith.constant 0 : index
      %56 = vector.load %arg3[%c0_41, %c0_42] : memref<8x128xf32, #tpu.memory_space<vmem>>, vector<8x128xf32>
      %c0_43 = arith.constant 0 : index
      %c0_44 = arith.constant 0 : index
      %57 = vector.load %arg15[%c0_43, %c0_44] : memref<8x128xf32, #tpu.memory_space<vmem>>, vector<8x128xf32>
      tpu.vector_store %arg15[%c0_43, %c0_44], %56 {strides = array<i32>} : memref<8x128xf32, #tpu.memory_space<vmem>>, vector<8x128xf32>,
    } else {
    }
    %c0 = arith.constant 0 : index
    %c0_1 = arith.constant 0 : index
    %c0_2 = arith.constant 0 : index
    %3 = vector.load %arg1[%c0, %c0_1, %c0_2] : memref<1x8x128xf32, #tpu.memory_space<vmem>>, vector<1x8x128xf32>
    %4 = vector.shape_cast %3 : vector<1x8x128xf32> to vector<8x128xf32>
    %c0_3 = arith.constant 0 : index
    %c0_4 = arith.constant 0 : index
    %5 = vector.load %arg14[%c0_3, %c0_4] : memref<8x128xf32, #tpu.memory_space<vmem>>, vector<8x128xf32>
    %c0_5 = arith.constant 0 : index
    %c0_6 = arith.constant 0 : index
    %6 = vector.load %arg15[%c0_5, %c0_6] : memref<8x128xf32, #tpu.memory_space<vmem>>, vector<8x128xf32>
    %7 = arith.truncf %4 : vector<8x128xf32> to vector<8x128xbf16>
    %c0_7 = arith.constant 0 : index
    %c0_8 = arith.constant 0 : index
    %8 = vector.load %arg4[%c0_7, %c0_8] : memref<128x128xbf16, #tpu.memory_space<vmem>>, vector<128x128xbf16>
    %cst = arith.constant dense<0.000000e+00> : vector<8x128xf32>
    %9 = tpu.matmul %7, %8, %cst {dimension_numbers = #tpu.dot_dimension_numbers<[1], [0], [0], [1], [0, 0, 1, 1], [], []>} : vector<8x128xbf16>, vector<128x128xbf16>, vector<8x128xf32> -> vector<8x128xf32>
    %c0_9 = arith.constant 0 : index
    %c0_10 = arith.constant 0 : index
    %10 = vector.load %arg5[%c0_9, %c0_10] : memref<1x128xf32, #tpu.memory_space<vmem>>, vector<1x128xf32>
    %11 = vector.broadcast %10 : vector<1x128xf32> to vector<8x128xf32>
    %12 = arith.addf %9, %11 : vector<8x128xf32>
    %cst_11 = arith.constant 0.000000e+00 : f32
    %13 = vector.broadcast %cst_11 : f32 to vector<8x128xf32>
    %14 = arith.maximumf %12, %13 : vector<8x128xf32>
    %15 = arith.truncf %14 : vector<8x128xf32> to vector<8x128xbf16>
    %c0_12 = arith.constant 0 : index
    %c0_13 = arith.constant 0 : index
    %16 = vector.load %arg6[%c0_12, %c0_13] : memref<128x512xbf16, #tpu.memory_space<vmem>>, vector<128x512xbf16>
    %cst_14 = arith.constant dense<0.000000e+00> : vector<8x512xf32>
    %17 = tpu.matmul %15, %16, %cst_14 {dimension_numbers = #tpu.dot_dimension_numbers<[1], [0], [0], [1], [0, 0, 1, 1], [], []>} : vector<8x128xbf16>, vector<128x512xbf16>, vector<8x512xf32> -> vector<8x512xf32>
    %18 = arith.truncf %5 : vector<8x128xf32> to vector<8x128xbf16>
    %c0_15 = arith.constant 0 : index
    %c0_16 = arith.constant 0 : index
    %19 = vector.load %arg7[%c0_15, %c0_16] : memref<128x512xbf16, #tpu.memory_space<vmem>>, vector<128x512xbf16>
    %cst_17 = arith.constant dense<0.000000e+00> : vector<8x512xf32>
    %20 = tpu.matmul %18, %19, %cst_17 {dimension_numbers = #tpu.dot_dimension_numbers<[1], [0], [0], [1], [0, 0, 1, 1], [], []>} : vector<8x128xbf16>, vector<128x512xbf16>, vector<8x512xf32> -> vector<8x512xf32>
    %21 = arith.addf %17, %20 : vector<8x512xf32>
    %c0_18 = arith.constant 0 : index
    %c0_19 = arith.constant 0 : index
    %22 = vector.load %arg8[%c0_18, %c0_19] : memref<1x512xf32, #tpu.memory_space<vmem>>, vector<1x512xf32>
    %23 = vector.broadcast %22 : vector<1x512xf32> to vector<8x512xf32>
    %24 = arith.addf %21, %23 : vector<8x512xf32>
    %25 = vector.extract_strided_slice %24 {offsets = [0, 0], sizes = [8, 384], strides = [1, 1]} : vector<8x512xf32> to vector<8x384xf32>
    %26 = arith.negf %25 : vector<8x384xf32>
    %27 = math.exp %26 : vector<8x384xf32>
    %cst_20 = arith.constant 1.000000e+00 : f32
    %28 = vector.broadcast %cst_20 : f32 to vector<8x384xf32>
    %29 = arith.addf %28, %27 : vector<8x384xf32>
    %30 = arith.divf %28, %29 : vector<8x384xf32>
    %31 = vector.extract_strided_slice %30 {offsets = [0, 0], sizes = [8, 128], strides = [1, 1]} : vector<8x384xf32> to vector<8x128xf32>
    %32 = vector.extract_strided_slice %30 {offsets = [0, 128], sizes = [8, 128], strides = [1, 1]} : vector<8x384xf32> to vector<8x128xf32>
    %33 = vector.extract_strided_slice %30 {offsets = [0, 256], sizes = [8, 128], strides = [1, 1]} : vector<8x384xf32> to vector<8x128xf32>
    %34 = vector.extract_strided_slice %24 {offsets = [0, 384], sizes = [8, 128], strides = [1, 1]} : vector<8x512xf32> to vector<8x128xf32>
    %35 = math.tanh %34 : vector<8x128xf32>
    %36 = arith.mulf %32, %6 : vector<8x128xf32>
    %37 = arith.mulf %31, %35 : vector<8x128xf32>
    %38 = arith.addf %36, %37 : vector<8x128xf32>
    %39 = math.tanh %38 : vector<8x128xf32>
    %40 = arith.mulf %33, %39 : vector<8x128xf32>
    %41 = arith.truncf %40 : vector<8x128xf32> to vector<8x128xbf16>
    %c0_21 = arith.constant 0 : index
    %c0_22 = arith.constant 0 : index
    %42 = vector.load %arg9[%c0_21, %c0_22] : memref<128x128xbf16, #tpu.memory_space<vmem>>, vector<128x128xbf16>
    %cst_23 = arith.constant dense<0.000000e+00> : vector<8x128xf32>
    %43 = tpu.matmul %41, %42, %cst_23 {dimension_numbers = #tpu.dot_dimension_numbers<[1], [0], [0], [1], [0, 0, 1, 1], [], []>} : vector<8x128xbf16>, vector<128x128xbf16>, vector<8x128xf32> -> vector<8x128xf32>
    %c0_24 = arith.constant 0 : index
    %c0_25 = arith.constant 0 : index
    %44 = vector.load %arg10[%c0_24, %c0_25] : memref<1x128xf32, #tpu.memory_space<vmem>>, vector<1x128xf32>
    %45 = vector.broadcast %44 : vector<1x128xf32> to vector<8x128xf32>
    %46 = arith.addf %43, %45 : vector<8x128xf32>
    %c0_26 = arith.constant 0 : index
    %c0_27 = arith.constant 0 : index
    %c0_28 = arith.constant 0 : index
    %47 = vector.load %arg11[%c0_26, %c0_27, %c0_28] : memref<1x8x128xf32, #tpu.memory_space<vmem>>, vector<1x8x128xf32>
    %48 = vector.shape_cast %47 : vector<1x8x128xf32> to vector<8x128xf32>
    %49 = vector.shape_cast %46 : vector<8x128xf32> to vector<1x8x128xf32>
    tpu.vector_store %arg11[%c0_26, %c0_27, %c0_28], %49 {strides = array<i32>} : memref<1x8x128xf32, #tpu.memory_space<vmem>>, vector<1x8x128xf32>,
    %c0_29 = arith.constant 0 : index
    %c0_30 = arith.constant 0 : index
    %50 = vector.load %arg14[%c0_29, %c0_30] : memref<8x128xf32, #tpu.memory_space<vmem>>, vector<8x128xf32>
    tpu.vector_store %arg14[%c0_29, %c0_30], %40 {strides = array<i32>} : memref<8x128xf32, #tpu.memory_space<vmem>>, vector<8x128xf32>,
    %c0_31 = arith.constant 0 : index
    %c0_32 = arith.constant 0 : index
    %51 = vector.load %arg15[%c0_31, %c0_32] : memref<8x128xf32, #tpu.memory_space<vmem>>, vector<8x128xf32>
    tpu.vector_store %arg15[%c0_31, %c0_32], %38 {strides = array<i32>} : memref<8x128xf32, #tpu.memory_space<vmem>>, vector<8x128xf32>,
    %c0_33 = arith.constant 0 : index
    %c0_34 = arith.constant 0 : index
    %52 = vector.load %arg12[%c0_33, %c0_34] : memref<8x128xf32, #tpu.memory_space<vmem>>, vector<8x128xf32>
    tpu.vector_store %arg12[%c0_33, %c0_34], %40 {strides = array<i32>} : memref<8x128xf32, #tpu.memory_space<vmem>>, vector<8x128xf32>,
    %c0_35 = arith.constant 0 : index
    %c0_36 = arith.constant 0 : index
    %53 = vector.load %arg13[%c0_35, %c0_36] : memref<8x128xf32, #tpu.memory_space<vmem>>, vector<8x128xf32>
    tpu.vector_store %arg13[%c0_35, %c0_36], %38 {strides = array<i32>} : memref<8x128xf32, #tpu.memory_space<vmem>>, vector<8x128xf32>,
    return
  }
  func.func @transform_0(%arg0: i32) -> (i32, i32, i32) {
    %c0_i32 = arith.constant 0 : i32
    %c0_i32_0 = arith.constant 0 : i32
    %c0_i32_1 = arith.constant 0 : i32
    return %arg0, %c0_i32, %c0_i32_0 : i32, i32, i32
  }
  func.func @transform_1(%arg0: i32) -> (i32, i32) {
    %c0_i32 = arith.constant 0 : i32
    %c0_i32_0 = arith.constant 0 : i32
    %c0_i32_1 = arith.constant 0 : i32
    return %c0_i32, %c0_i32_0 : i32, i32
  }
  func.func @transform_2(%arg0: i32) -> (i32, i32) {
    %c0_i32 = arith.constant 0 : i32
    %c0_i32_0 = arith.constant 0 : i32
    %c0_i32_1 = arith.constant 0 : i32
    return %c0_i32, %c0_i32_0 : i32, i32
  }
  func.func @transform_3(%arg0: i32) -> (i32, i32) {
    %c0_i32 = arith.constant 0 : i32
    %c0_i32_0 = arith.constant 0 : i32
    %c0_i32_1 = arith.constant 0 : i32
    return %c0_i32, %c0_i32_0 : i32, i32
  }
  func.func @transform_4(%arg0: i32) -> (i32, i32) {
    %c0_i32 = arith.constant 0 : i32
    %c0_i32_0 = arith.constant 0 : i32
    %c0_i32_1 = arith.constant 0 : i32
    return %c0_i32, %c0_i32_0 : i32, i32
  }
  func.func @transform_5(%arg0: i32) -> (i32, i32) {
    %c0_i32 = arith.constant 0 : i32
    %c0_i32_0 = arith.constant 0 : i32
    %c0_i32_1 = arith.constant 0 : i32
    return %c0_i32, %c0_i32_0 : i32, i32
  }
  func.func @transform_6(%arg0: i32) -> (i32, i32) {
    %c0_i32 = arith.constant 0 : i32
    %c0_i32_0 = arith.constant 0 : i32
    %c0_i32_1 = arith.constant 0 : i32
    return %c0_i32, %c0_i32_0 : i32, i32
  }
  func.func @transform_7(%arg0: i32) -> (i32, i32) {
    %c0_i32 = arith.constant 0 : i32
    %c0_i32_0 = arith.constant 0 : i32
    %c0_i32_1 = arith.constant 0 : i32
    return %c0_i32, %c0_i32_0 : i32, i32
  }
  func.func @transform_8(%arg0: i32) -> (i32, i32) {
    %c0_i32 = arith.constant 0 : i32
    %c0_i32_0 = arith.constant 0 : i32
    %c0_i32_1 = arith.constant 0 : i32
    return %c0_i32, %c0_i32_0 : i32, i32
  }
  func.func @transform_9(%arg0: i32) -> (i32, i32) {
    %c0_i32 = arith.constant 0 : i32
    %c0_i32_0 = arith.constant 0 : i32
    %c0_i32_1 = arith.constant 0 : i32
    return %c0_i32, %c0_i32_0 : i32, i32
  }
  func.func @transform_10(%arg0: i32) -> (i32, i32, i32) {
    %c0_i32 = arith.constant 0 : i32
    %c0_i32_0 = arith.constant 0 : i32
    %c0_i32_1 = arith.constant 0 : i32
    return %arg0, %c0_i32, %c0_i32_0 : i32, i32, i32
  }
  func.func @transform_11(%arg0: i32) -> (i32, i32) {
    %c0_i32 = arith.constant 0 : i32
    %c0_i32_0 = arith.constant 0 : i32
    %c0_i32_1 = arith.constant 0 : i32
    return %c0_i32, %c0_i32_0 : i32, i32
  }
  func.func @transform_12(%arg0: i32) -> (i32, i32) {
    %c0_i32 = arith.constant 0 : i32
    %c0_i32_0 = arith.constant 0 : i32
    %c0_i32_1 = arith.constant 0 : i32
    return %c0_i32, %c0_i32_0 : i32, i32
  }
}

</mosaic_0001>

<llo_original>
// kernel: lstm_decoder_decode.1
$region0: #{lstm_decoder_decode.1}
  #allocation0 [shape = 'u32[]', space=smem, size = 0x4, offset = 0x4, fixed_abs, tag = 'smem constant byte address 0x4 - core index']
  #allocation1 [shape = 'u32[72,128]{1,0:T(1,128)}', space=vmem, size = 0x9000, scoped, tag = 'internal scratch']
  #allocation2 [shape = 'f32[8,128]{1,0:T(8,128)}', space=vmem, size = 0x1000, scoped, tag = 'scratch operand']
  #allocation3 [shape = 'f32[8,128]{1,0:T(8,128)}', space=vmem, size = 0x1000, scoped, tag = 'scratch operand']
  %s0 = inlined_call_operand.vmem [shape: f32[4,8,128], index: 0, kind: input, shape index: {}]
  %s1 = inlined_call_operand.vmem [shape: f32[8,128], index: 1, kind: input, shape index: {}]
  %s2 = inlined_call_operand.vmem [shape: f32[8,128], index: 2, kind: input, shape index: {}]
  %s3 = inlined_call_operand.vmem [shape: bf16[128,128], index: 3, kind: input, shape index: {}]
  %s4 = inlined_call_operand.hbm [shape: f32[1,128], index: 4, kind: input, shape index: {}]
  %s5 = inlined_call_operand.hbm [shape: bf16[128,512], index: 5, kind: input, shape index: {}]
  %s6 = inlined_call_operand.hbm [shape: bf16[128,512], index: 6, kind: input, shape index: {}]
  %s7 = inlined_call_operand.hbm [shape: f32[1,512], index: 7, kind: input, shape index: {}]
  %s8 = inlined_call_operand.hbm [shape: bf16[128,128], index: 8, kind: input, shape index: {}]
  %s9 = inlined_call_operand.hbm [shape: f32[1,128], index: 9, kind: input, shape index: {}]
  %s10 = inlined_call_operand.vmem [shape: f32[4,8,128], index: 10, kind: output, shape index: {0}]
  %s11 = inlined_call_operand.vmem [shape: f32[8,128], index: 11, kind: output, shape index: {1}]
  %s12 = inlined_call_operand.vmem [shape: f32[8,128], index: 12, kind: output, shape index: {2}]
  %13 = xla_tuple %s10, %s11, %s12
  %s14 = sld [smem:[#allocation0]]
  $region117: #{lstm_decoder_decode.1} parent=0
    _
  %s16 = ssub.s32 1, %s14
  %s17 = scalar_select 0, %s16, %s14
  $region1: #{lstm_decoder_decode.1} parent=0
    #allocation4 [shape = 'u8[512]{0}', space=vmem, size = 0x400, scoped, tag = 'input window, operand 4, single buffered']
    #allocation5 [shape = 's32[2]{0}', space=sflag, size = 0x8, scoped, tag = 'scoped memory for lstm_decoder_decode.1']
    #allocation6 [shape = 'u8[131072]{0}', space=vmem, size = 0x20000, scoped, tag = 'input window, operand 5, single buffered']
    #allocation7 [shape = 's32[1]{0}', space=sflag, size = 0x4, scoped, tag = 'scoped memory for lstm_decoder_decode.1']
    #allocation8 [shape = 'u8[131072]{0}', space=vmem, size = 0x20000, scoped, tag = 'input window, operand 6, single buffered']
    #allocation9 [shape = 'u8[2048]{0}', space=vmem, size = 0x800, scoped, tag = 'input window, operand 7, single buffered']
    #allocation10 [shape = 's32[1]{0}', space=sflag, size = 0x4, scoped, tag = 'scoped memory for lstm_decoder_decode.1']
    #allocation11 [shape = 'u8[32768]{0}', space=vmem, size = 0x8000, scoped, tag = 'input window, operand 8, single buffered']
    #allocation12 [shape = 'u8[512]{0}', space=vmem, size = 0x400, scoped, tag = 'input window, operand 9, single buffered']
    #allocation13 [shape = 's32[1]{0}', space=sflag, size = 0x4, scoped, tag = 'scoped memory for lstm_decoder_decode.1']
    %18 = vsyncpa [#allocation5], 0
    %19 = vsyncpa [#allocation7], 0
    %20 = vsyncpa [#allocation10], 0
    %21 = vsyncpa [#allocation13], 0
    loop: start=0, step=1, limit=6
    $region2: #{lstm_decoder_decode.1} parent=1 // loop_pre_header
      _
    $region3: #{lstm_decoder_decode.1} parent=1 // loop_header
      %s23 = sphi 0, %s27
      %p24 = scmp.ge.s32.totalorder %s23, 6
      %s33 = sphi 0, %s35
      %s36 = sphi 0, %s33
      %s37 = sphi 0, %s36
      %s53 = sphi 0, %s37
      %s57 = sphi 0, %s57
      %s59 = sphi 0, %s57
      %s60 = sphi 0, %s59
      %s74 = sphi 0, %s60
      %s78 = sphi 0, %s78
      %s80 = sphi 0, %s78
      %s81 = sphi 0, %s80
      %s95 = sphi 0, %s81
      %s99 = sphi 0, %s99
      %s101 = sphi 0, %s99
      %s102 = sphi 0, %s101
      %s116 = sphi 0, %s102
      %s120 = sphi 0, %s120
      %s122 = sphi 0, %s120
      %s123 = sphi 0, %s122
      %s137 = sphi 0, %s123
      %s141 = sphi 0, %s141
      %s143 = sphi 0, %s141
      %s144 = sphi 0, %s143
      %s158 = sphi 0, %s144
      %s162 = sphi 0, %s162
      %s164 = sphi 0, %s162
      %s165 = sphi 0, %s164
      %s179 = sphi 0, %s165
      %s183 = sphi 0, %s183
      %s185 = sphi 0, %s183
      %s186 = sphi 0, %s185
      %s200 = sphi 0, %s186
      %s204 = sphi 0, %s204
      %s206 = sphi 0, %s204
      %s207 = sphi 0, %s206
      %s221 = sphi 0, %s207
      %s225 = sphi 0, %s225
      %s227 = sphi 0, %s225
      %s228 = sphi 0, %s227
      %s242 = sphi 0, %s228
      %s248 = sphi 0, %s250
      %s251 = sphi 0, %s248
      %s252 = sphi 0, %s251
      %s268 = sphi 0, %s252
      %s272 = sphi 0, %s272
      %s274 = sphi 0, %s272
      %s275 = sphi 0, %s274
      %s289 = sphi 0, %s275
      %s293 = sphi 0, %s293
      %s295 = sphi 0, %s293
      %s296 = sphi 0, %s295
      %s310 = sphi 0, %s296
    $region4: #{lstm_decoder_decode.1} parent=1 // loop_header_branch
      %26 = sbr.rel (%p24) target = $region8
    $region5: #{lstm_decoder_decode.1} parent=1 // loop_body
      %s28 = ssub.s32 %s23, 1
      %s29 = ssub.s32 %s23, 2
      %s30 = sadd.s32 %s23, 1
      %s31 = ssub.s32 %s23, %s30
      %p32 = scmp.eq.s32.totalorder %s31, 0
      %s34 = sadd.s32 %s33, 1
      %s35 = scalar_select %p32, %s33, %s34
      %p38 = pneg %p32
      %p39 = scmp.eq.s32.totalorder %s23, 3
      %p40 = por %p38, %p39
      %p41 = scmp.ne.s32.totalorder %s33, %s36
      %p42 = scmp.eq.s32.totalorder %s23, 0
      %p43 = por %p41, %p42
      %p44 = scmp.ne.s32.totalorder %s33, %s36
      %p45 = scmp.eq.s32.totalorder %s28, 3
      %p46 = por %p44, %p45
      %p47 = scmp.ne.s32.totalorder %s36, %s37
      %p48 = scmp.eq.s32.totalorder %s28, 0
      %p49 = por %p47, %p48
      %p50 = scmp.ne.s32.totalorder %s36, %s37
      %p51 = scmp.eq.s32.totalorder %s29, 3
      %p52 = por %p50, %p51
      %p54 = scmp.ne.s32.totalorder %s37, %s53
      %p55 = scmp.eq.s32.totalorder %s29, 0
      %p56 = por %p54, %p55
      %s58 = sadd.s32 %s57, 1
      %p61 = scmp.eq.s32.totalorder %s23, 3
      %p62 = scmp.ne.s32.totalorder %s57, %s59
      %p63 = scmp.eq.s32.totalorder %s23, 0
      %p64 = por %p62, %p63
      %p65 = scmp.ne.s32.totalorder %s57, %s59
      %p66 = scmp.eq.s32.totalorder %s28, 3
      %p67 = por %p65, %p66
      %p68 = scmp.ne.s32.totalorder %s59, %s60
      %p69 = scmp.eq.s32.totalorder %s28, 0
      %p70 = por %p68, %p69
      %p71 = scmp.ne.s32.totalorder %s59, %s60
      %p72 = scmp.eq.s32.totalorder %s29, 3
      %p73 = por %p71, %p72
      %p75 = scmp.ne.s32.totalorder %s60, %s74
      %p76 = scmp.eq.s32.totalorder %s29, 0
      %p77 = por %p75, %p76
      %s79 = sadd.s32 %s78, 1
      %p82 = scmp.eq.s32.totalorder %s23, 3
      %p83 = scmp.ne.s32.totalorder %s78, %s80
      %p84 = scmp.eq.s32.totalorder %s23, 0
      %p85 = por %p83, %p84
      %p86 = scmp.ne.s32.totalorder %s78, %s80
      %p87 = scmp.eq.s32.totalorder %s28, 3
      %p88 = por %p86, %p87
      %p89 = scmp.ne.s32.totalorder %s80, %s81
      %p90 = scmp.eq.s32.totalorder %s28, 0
      %p91 = por %p89, %p90
      %p92 = scmp.ne.s32.totalorder %s80, %s81
      %p93 = scmp.eq.s32.totalorder %s29, 3
      %p94 = por %p92, %p93
      %p96 = scmp.ne.s32.totalorder %s81, %s95
      %p97 = scmp.eq.s32.totalorder %s29, 0
      %p98 = por %p96, %p97
      %s100 = sadd.s32 %s99, 1
      %p103 = scmp.eq.s32.totalorder %s23, 3
      %p104 = scmp.ne.s32.totalorder %s99, %s101
      %p105 = scmp.eq.s32.totalorder %s23, 0
      %p106 = por %p104, %p105
      %p107 = scmp.ne.s32.totalorder %s99, %s101
      %p108 = scmp.eq.s32.totalorder %s28, 3
      %p109 = por %p107, %p108
      %p110 = scmp.ne.s32.totalorder %s101, %s102
      %p111 = scmp.eq.s32.totalorder %s28, 0
      %p112 = por %p110, %p111
      %p113 = scmp.ne.s32.totalorder %s101, %s102
      %p114 = scmp.eq.s32.totalorder %s29, 3
      %p115 = por %p113, %p114
      %p117 = scmp.ne.s32.totalorder %s102, %s116
      %p118 = scmp.eq.s32.totalorder %s29, 0
      %p119 = por %p117, %p118
      %s121 = sadd.s32 %s120, 1
      %p124 = scmp.eq.s32.totalorder %s23, 3
      %p125 = scmp.ne.s32.totalorder %s120, %s122
      %p126 = scmp.eq.s32.totalorder %s23, 0
      %p127 = por %p125, %p126
      %p128 = scmp.ne.s32.totalorder %s120, %s122
      %p129 = scmp.eq.s32.totalorder %s28, 3
      %p130 = por %p128, %p129
      %p131 = scmp.ne.s32.totalorder %s122, %s123
      %p132 = scmp.eq.s32.totalorder %s28, 0
      %p133 = por %p131, %p132
      %p134 = scmp.ne.s32.totalorder %s122, %s123
      %p135 = scmp.eq.s32.totalorder %s29, 3
      %p136 = por %p134, %p135
      %p138 = scmp.ne.s32.totalorder %s123, %s137
      %p139 = scmp.eq.s32.totalorder %s29, 0
      %p140 = por %p138, %p139
      %s142 = sadd.s32 %s141, 1
      %p145 = scmp.eq.s32.totalorder %s23, 3
      %p146 = scmp.ne.s32.totalorder %s141, %s143
      %p147 = scmp.eq.s32.totalorder %s23, 0
      %p148 = por %p146, %p147
      %p149 = scmp.ne.s32.totalorder %s141, %s143
      %p150 = scmp.eq.s32.totalorder %s28, 3
      %p151 = por %p149, %p150
      %p152 = scmp.ne.s32.totalorder %s143, %s144
      %p153 = scmp.eq.s32.totalorder %s28, 0
      %p154 = por %p152, %p153
      %p155 = scmp.ne.s32.totalorder %s143, %s144
      %p156 = scmp.eq.s32.totalorder %s29, 3
      %p157 = por %p155, %p156
      %p159 = scmp.ne.s32.totalorder %s144, %s158
      %p160 = scmp.eq.s32.totalorder %s29, 0
      %p161 = por %p159, %p160
      %s163 = sadd.s32 %s162, 1
      %p166 = scmp.eq.s32.totalorder %s23, 3
      %p167 = scmp.ne.s32.totalorder %s162, %s164
      %p168 = scmp.eq.s32.totalorder %s23, 0
      %p169 = por %p167, %p168
      %p170 = scmp.ne.s32.totalorder %s162, %s164
      %p171 = scmp.eq.s32.totalorder %s28, 3
      %p172 = por %p170, %p171
      %p173 = scmp.ne.s32.totalorder %s164, %s165
      %p174 = scmp.eq.s32.totalorder %s28, 0
      %p175 = por %p173, %p174
      %p176 = scmp.ne.s32.totalorder %s164, %s165
      %p177 = scmp.eq.s32.totalorder %s29, 3
      %p178 = por %p176, %p177
      %p180 = scmp.ne.s32.totalorder %s165, %s179
      %p181 = scmp.eq.s32.totalorder %s29, 0
      %p182 = por %p180, %p181
      %s184 = sadd.s32 %s183, 1
      %p187 = scmp.eq.s32.totalorder %s23, 3
      %p188 = scmp.ne.s32.totalorder %s183, %s185
      %p189 = scmp.eq.s32.totalorder %s23, 0
      %p190 = por %p188, %p189
      %p191 = scmp.ne.s32.totalorder %s183, %s185
      %p192 = scmp.eq.s32.totalorder %s28, 3
      %p193 = por %p191, %p192
      %p194 = scmp.ne.s32.totalorder %s185, %s186
      %p195 = scmp.eq.s32.totalorder %s28, 0
      %p196 = por %p194, %p195
      %p197 = scmp.ne.s32.totalorder %s185, %s186
      %p198 = scmp.eq.s32.totalorder %s29, 3
      %p199 = por %p197, %p198
      %p201 = scmp.ne.s32.totalorder %s186, %s200
      %p202 = scmp.eq.s32.totalorder %s29, 0
      %p203 = por %p201, %p202
      %s205 = sadd.s32 %s204, 1
      %p208 = scmp.eq.s32.totalorder %s23, 3
      %p209 = scmp.ne.s32.totalorder %s204, %s206
      %p210 = scmp.eq.s32.totalorder %s23, 0
      %p211 = por %p209, %p210
      %p212 = scmp.ne.s32.totalorder %s204, %s206
      %p213 = scmp.eq.s32.totalorder %s28, 3
      %p214 = por %p212, %p213
      %p215 = scmp.ne.s32.totalorder %s206, %s207
      %p216 = scmp.eq.s32.totalorder %s28, 0
      %p217 = por %p215, %p216
      %p218 = scmp.ne.s32.totalorder %s206, %s207
      %p219 = scmp.eq.s32.totalorder %s29, 3
      %p220 = por %p218, %p219
      %p222 = scmp.ne.s32.totalorder %s207, %s221
      %p223 = scmp.eq.s32.totalorder %s29, 0
      %p224 = por %p222, %p223
      %s226 = sadd.s32 %s225, 1
      %p229 = scmp.eq.s32.totalorder %s23, 3
      %p230 = scmp.ne.s32.totalorder %s225, %s227
      %p231 = scmp.eq.s32.totalorder %s23, 0
      %p232 = por %p230, %p231
      %p233 = scmp.ne.s32.totalorder %s225, %s227
      %p234 = scmp.eq.s32.totalorder %s28, 3
      %p235 = por %p233, %p234
      %p236 = scmp.ne.s32.totalorder %s227, %s228
      %p237 = scmp.eq.s32.totalorder %s28, 0
      %p238 = por %p236, %p237
      %p239 = scmp.ne.s32.totalorder %s227, %s228
      %p240 = scmp.eq.s32.totalorder %s29, 3
      %p241 = por %p239, %p240
      %p243 = scmp.ne.s32.totalorder %s228, %s242
      %p244 = scmp.eq.s32.totalorder %s29, 0
      %p245 = por %p243, %p244
      %s246 = ssub.s32 %s23, %s30
      %p247 = scmp.eq.s32.totalorder %s246, 0
      %s249 = sadd.s32 %s248, 1
      %s250 = scalar_select %p247, %s248, %s249
      %p253 = pneg %p247
      %p254 = scmp.eq.s32.totalorder %s23, 3
      %p255 = por %p253, %p254
      %p256 = scmp.ne.s32.totalorder %s248, %s251
      %p257 = scmp.eq.s32.totalorder %s23, 0
      %p258 = por %p256, %p257
      %p259 = scmp.ne.s32.totalorder %s248, %s251
      %p260 = scmp.eq.s32.totalorder %s28, 3
      %p261 = por %p259, %p260
      %p262 = scmp.ne.s32.totalorder %s251, %s252
      %p263 = scmp.eq.s32.totalorder %s28, 0
      %p264 = por %p262, %p263
      %p265 = scmp.ne.s32.totalorder %s251, %s252
      %p266 = scmp.eq.s32.totalorder %s29, 3
      %p267 = por %p265, %p266
      %p269 = scmp.ne.s32.totalorder %s252, %s268
      %p270 = scmp.eq.s32.totalorder %s29, 0
      %p271 = por %p269, %p270
      %s273 = sadd.s32 %s272, 1
      %p276 = scmp.eq.s32.totalorder %s23, 3
      %p277 = scmp.ne.s32.totalorder %s272, %s274
      %p278 = scmp.eq.s32.totalorder %s23, 0
      %p279 = por %p277, %p278
      %p280 = scmp.ne.s32.totalorder %s272, %s274
      %p281 = scmp.eq.s32.totalorder %s28, 3
      %p282 = por %p280, %p281
      %p283 = scmp.ne.s32.totalorder %s274, %s275
      %p284 = scmp.eq.s32.totalorder %s28, 0
      %p285 = por %p283, %p284
      %p286 = scmp.ne.s32.totalorder %s274, %s275
      %p287 = scmp.eq.s32.totalorder %s29, 3
      %p288 = por %p286, %p287
      %p290 = scmp.ne.s32.totalorder %s275, %s289
      %p291 = scmp.eq.s32.totalorder %s29, 0
      %p292 = por %p290, %p291
      %s294 = sadd.s32 %s293, 1
      %p297 = scmp.eq.s32.totalorder %s23, 3
      %p298 = scmp.ne.s32.totalorder %s293, %s295
      %p299 = scmp.eq.s32.totalorder %s23, 0
      %p300 = por %p298, %p299
      %p301 = scmp.ne.s32.totalorder %s293, %s295
      %p302 = scmp.eq.s32.totalorder %s28, 3
      %p303 = por %p301, %p302
      %p304 = scmp.ne.s32.totalorder %s295, %s296
      %p305 = scmp.eq.s32.totalorder %s28, 0
      %p306 = por %p304, %p305
      %p307 = scmp.ne.s32.totalorder %s295, %s296
      %p308 = scmp.eq.s32.totalorder %s29, 3
      %p309 = por %p307, %p308
      %p311 = scmp.ne.s32.totalorder %s296, %s310
      %p312 = scmp.eq.s32.totalorder %s29, 0
      %p313 = por %p311, %p312
      %p314 = scmp.le.s32.totalorder 1, %s23
      %p315 = scmp.lt.s32.totalorder %s23, 5
      %p316 = pnand %p314, %p315
      %p317 = pneg %p316
      // Predicated region
      $region9: #{lstm_decoder_decode.1} parent=5 // pred_check
        _
      $region10: #{lstm_decoder_decode.1} parent=5 // pred_check_branch
        %319 = sbr.rel (%p316) target = $region12
      $region11: #{lstm_decoder_decode.1} parent=5 // pred_region
        %s320 = ssub.s32 %s23, 1
        // Predicated region
        $region13: #{lstm_decoder_decode.1} parent=11 // pred_check
          %p321 = pneg %p70
        $region14: #{lstm_decoder_decode.1} parent=11 // pred_check_branch
          %323 = sbr.rel (%p321) target = $region16
        $region15: #{lstm_decoder_decode.1} parent=11 // pred_region
          _
        $region16: #{lstm_decoder_decode.1} parent=11 // pred_fallthru
          _
        // Predicated region
        $region17: #{lstm_decoder_decode.1} parent=11 // pred_check
          %p324 = pneg %p91
        $region18: #{lstm_decoder_decode.1} parent=11 // pred_check_branch
          %326 = sbr.rel (%p324) target = $region20
        $region19: #{lstm_decoder_decode.1} parent=11 // pred_region
          _
        $region20: #{lstm_decoder_decode.1} parent=11 // pred_fallthru
          _
        // Predicated region
        $region21: #{lstm_decoder_decode.1} parent=11 // pred_check
          %p327 = pneg %p112
        $region22: #{lstm_decoder_decode.1} parent=11 // pred_check_branch
          %329 = sbr.rel (%p327) target = $region24
        $region23: #{lstm_decoder_decode.1} parent=11 // pred_region
          _
        $region24: #{lstm_decoder_decode.1} parent=11 // pred_fallthru
          _
        // Predicated region
        $region25: #{lstm_decoder_decode.1} parent=11 // pred_check
          %p330 = pneg %p133
        $region26: #{lstm_decoder_decode.1} parent=11 // pred_check_branch
          %332 = sbr.rel (%p330) target = $region28
        $region27: #{lstm_decoder_decode.1} parent=11 // pred_region
          %334 = vsyncadd [#allocation5], 0
          %s336 = sshll.u32 %s4, 4
          %s337 = int_to_ptr.hbm [resolvable:$true] %s336
          %s338 = sshll.u32 [#allocation4], 4
          %s339 = int_to_ptr.vmem [resolvable:$true] %s338
          %341 = dma.hbm_to_vmem [thread:$0]  %s337, 16, %s339, [#allocation5]
        $region28: #{lstm_decoder_decode.1} parent=11 // pred_fallthru
          _
        // Predicated region
        $region29: #{lstm_decoder_decode.1} parent=11 // pred_check
          %p342 = pneg %p154
        $region30: #{lstm_decoder_decode.1} parent=11 // pred_check_branch
          %344 = sbr.rel (%p342) target = $region32
        $region31: #{lstm_decoder_decode.1} parent=11 // pred_region
          %346 = vsyncadd [#allocation7], 0
          %s347 = sshll.u32 %s5, 4
          %s348 = int_to_ptr.hbm [resolvable:$true] %s347
          %s349 = sshll.u32 [#allocation6], 4
          %s350 = int_to_ptr.vmem [resolvable:$true] %s349
          %355 = dma.hbm_to_vmem [thread:$0]  %s348, 4096, %s350, [#allocation7], 256, 256, 16
        $region32: #{lstm_decoder_decode.1} parent=11 // pred_fallthru
          _
        // Predicated region
        $region33: #{lstm_decoder_decode.1} parent=11 // pred_check
          %p356 = pneg %p175
        $region34: #{lstm_decoder_decode.1} parent=11 // pred_check_branch
          %358 = sbr.rel (%p356) target = $region36
        $region35: #{lstm_decoder_decode.1} parent=11 // pred_region
          %360 = vsyncadd [#allocation7], 0
          %s361 = sshll.u32 %s6, 4
          %s362 = int_to_ptr.hbm [resolvable:$true] %s361
          %s363 = sshll.u32 [#allocation8], 4
          %s364 = int_to_ptr.vmem [resolvable:$true] %s363
          %369 = dma.hbm_to_vmem [thread:$0]  %s362, 4096, %s364, [#allocation7], 256, 256, 16
        $region36: #{lstm_decoder_decode.1} parent=11 // pred_fallthru
          _
        // Predicated region
        $region37: #{lstm_decoder_decode.1} parent=11 // pred_check
          %p370 = pneg %p196
        $region38: #{lstm_decoder_decode.1} parent=11 // pred_check_branch
          %372 = sbr.rel (%p370) target = $region40
        $region39: #{lstm_decoder_decode.1} parent=11 // pred_region
          %374 = vsyncadd [#allocation10], 0
          %s376 = sshll.u32 %s7, 4
          %s377 = int_to_ptr.hbm [resolvable:$true] %s376
          %s378 = sshll.u32 [#allocation9], 4
          %s379 = int_to_ptr.vmem [resolvable:$true] %s378
          %381 = dma.hbm_to_vmem [thread:$0]  %s377, 64, %s379, [#allocation10]
        $region40: #{lstm_decoder_decode.1} parent=11 // pred_fallthru
          _
        // Predicated region
        $region41: #{lstm_decoder_decode.1} parent=11 // pred_check
          %p382 = pneg %p217
        $region42: #{lstm_decoder_decode.1} parent=11 // pred_check_branch
          %384 = sbr.rel (%p382) target = $region44
        $region43: #{lstm_decoder_decode.1} parent=11 // pred_region
          %386 = vsyncadd [#allocation10], 0
          %s387 = sshll.u32 %s8, 4
          %s388 = int_to_ptr.hbm [resolvable:$true] %s387
          %s389 = sshll.u32 [#allocation11], 4
          %s390 = int_to_ptr.vmem [resolvable:$true] %s389
          %395 = dma.hbm_to_vmem [thread:$0]  %s388, 1024, %s390, [#allocation10], 64, 64, 4
        $region44: #{lstm_decoder_decode.1} parent=11 // pred_fallthru
          _
        // Predicated region
        $region45: #{lstm_decoder_decode.1} parent=11 // pred_check
          %p396 = pneg %p238
        $region46: #{lstm_decoder_decode.1} parent=11 // pred_check_branch
          %398 = sbr.rel (%p396) target = $region48
        $region47: #{lstm_decoder_decode.1} parent=11 // pred_region
          %400 = vsyncadd [#allocation13], 0
          %s402 = sshll.u32 %s9, 4
          %s403 = int_to_ptr.hbm [resolvable:$true] %s402
          %s404 = sshll.u32 [#allocation12], 4
          %s405 = int_to_ptr.vmem [resolvable:$true] %s404
          %407 = dma.hbm_to_vmem [thread:$0]  %s403, 16, %s405, [#allocation13]
        $region48: #{lstm_decoder_decode.1} parent=11 // pred_fallthru
          _
      $region12: #{lstm_decoder_decode.1} parent=5 // pred_fallthru
        _
      %p408 = scmp.lt.s32.totalorder %s23, 4
      // Predicated region
      $region49: #{lstm_decoder_decode.1} parent=5 // pred_check
        %p409 = pneg %p408
      $region50: #{lstm_decoder_decode.1} parent=5 // pred_check_branch
        %411 = sbr.rel (%p409) target = $region52
      $region51: #{lstm_decoder_decode.1} parent=5 // pred_region
        // Predicated region
        $region53: #{lstm_decoder_decode.1} parent=51 // pred_check
          %p412 = pneg %p43
        $region54: #{lstm_decoder_decode.1} parent=51 // pred_check_branch
          %414 = sbr.rel (%p412) target = $region56
        $region55: #{lstm_decoder_decode.1} parent=51 // pred_region
          %p415 = scmp.lt.s32.totalorder %s23, 3
          %s416 = scalar_select %p415, %s23, 3
          %s417 = smul.addr %s416, 8
          %s418 = scalar_lea.vmem %s0, %s417
        $region56: #{lstm_decoder_decode.1} parent=51 // pred_fallthru
          _
      $region52: #{lstm_decoder_decode.1} parent=5 // pred_fallthru
        _
      %p419 = scmp.le.s32.totalorder 1, %s23
      %p420 = scmp.lt.s32.totalorder %s23, 5
      %p421 = pnand %p419, %p420
      %p422 = pneg %p421
      // Predicated region
      $region57: #{lstm_decoder_decode.1} parent=5 // pred_check
        _
      $region58: #{lstm_decoder_decode.1} parent=5 // pred_check_branch
        %424 = sbr.rel (%p421) target = $region60
      $region59: #{lstm_decoder_decode.1} parent=5 // pred_region
        %s425 = ssub.s32 %s23, 1
        // Predicated region
        $region61: #{lstm_decoder_decode.1} parent=59 // pred_check
          %p426 = pneg %p133
        $region62: #{lstm_decoder_decode.1} parent=59 // pred_check_branch
          %428 = sbr.rel (%p426) target = $region64
        $region63: #{lstm_decoder_decode.1} parent=59 // pred_region
          %430 = dma.done [#allocation5], 16
        $region64: #{lstm_decoder_decode.1} parent=59 // pred_fallthru
          _
        // Predicated region
        $region65: #{lstm_decoder_decode.1} parent=59 // pred_check
          %p431 = pneg %p154
        $region66: #{lstm_decoder_decode.1} parent=59 // pred_check_branch
          %433 = sbr.rel (%p431) target = $region68
        $region67: #{lstm_decoder_decode.1} parent=59 // pred_region
          %435 = dma.done [#allocation7], 4096
        $region68: #{lstm_decoder_decode.1} parent=59 // pred_fallthru
          _
        // Predicated region
        $region69: #{lstm_decoder_decode.1} parent=59 // pred_check
          %p436 = pneg %p175
        $region70: #{lstm_decoder_decode.1} parent=59 // pred_check_branch
          %438 = sbr.rel (%p436) target = $region72
        $region71: #{lstm_decoder_decode.1} parent=59 // pred_region
          %440 = dma.done [#allocation7], 4096
        $region72: #{lstm_decoder_decode.1} parent=59 // pred_fallthru
          _
        // Predicated region
        $region73: #{lstm_decoder_decode.1} parent=59 // pred_check
          %p441 = pneg %p196
        $region74: #{lstm_decoder_decode.1} parent=59 // pred_check_branch
          %443 = sbr.rel (%p441) target = $region76
        $region75: #{lstm_decoder_decode.1} parent=59 // pred_region
          %445 = dma.done [#allocation10], 64
        $region76: #{lstm_decoder_decode.1} parent=59 // pred_fallthru
          _
        // Predicated region
        $region77: #{lstm_decoder_decode.1} parent=59 // pred_check
          %p446 = pneg %p217
        $region78: #{lstm_decoder_decode.1} parent=59 // pred_check_branch
          %448 = sbr.rel (%p446) target = $region80
        $region79: #{lstm_decoder_decode.1} parent=59 // pred_region
          %450 = dma.done [#allocation10], 1024
        $region80: #{lstm_decoder_decode.1} parent=59 // pred_fallthru
          _
        // Predicated region
        $region81: #{lstm_decoder_decode.1} parent=59 // pred_check
          %p451 = pneg %p238
        $region82: #{lstm_decoder_decode.1} parent=59 // pred_check_branch
          %453 = sbr.rel (%p451) target = $region84
        $region83: #{lstm_decoder_decode.1} parent=59 // pred_region
          %455 = dma.done [#allocation13], 16
        $region84: #{lstm_decoder_decode.1} parent=59 // pred_fallthru
          _
        %p456 = scmp.lt.s32.totalorder %s28, 3
        %s457 = scalar_select %p456, %s28, 3
        %s458 = smul.addr %s457, 8
        %s459 = scalar_lea.vmem %s0, %s458
        %p460 = pneg %p49
        %p461 = pneg %p46
        %p462 = pneg %p70
        %p463 = pneg %p67
        %p464 = pneg %p91
        %p465 = pneg %p88
        %p466 = pneg %p112
        %p467 = pneg %p109
        %p468 = pneg %p133
        %p469 = pneg %p130
        %p470 = pneg %p154
        %p471 = pneg %p151
        %p472 = pneg %p175
        %p473 = pneg %p172
        %p474 = pneg %p196
        %p475 = pneg %p193
        %p476 = pneg %p217
        %p477 = pneg %p214
        %p478 = pneg %p238
        %p479 = pneg %p235
        %p480 = pneg %p264
        %p481 = pneg %p261
        %p482 = scmp.lt.s32.totalorder %s28, 3
        %s483 = scalar_select %p482, %s28, 3
        %s484 = smul.addr %s483, 8
        %s485 = scalar_lea.vmem %s10, %s484
        %p486 = pneg %p285
        %p487 = pneg %p282
        %p488 = pneg %p306
        %p489 = pneg %p303
        %p490 = scmp.lt.s32.totalorder %s28, 3
        %s491 = scalar_select %p490, %s28, 3
        %s492 = smul.addr %s491, 8
        %s493 = scalar_lea.vmem %s0, %s492
        %p494 = scmp.lt.s32.totalorder %s28, 3
        %s495 = scalar_select %p494, %s28, 3
        %s496 = smul.addr %s495, 8
        %s497 = scalar_lea.vmem %s10, %s496
        %p498 = scmp.eq.s32.totalorder %s28, 0
        // Predicated region
        $region85: #{lstm_decoder_decode.1} parent=59 // pred_check
          %p499 = pneg %p498
        $region86: #{lstm_decoder_decode.1} parent=59 // pred_check_branch
          %501 = sbr.rel (%p499) target = $region88
        $region87: #{lstm_decoder_decode.1} parent=59 // pred_region
          %v502 = vld [vmem:[%s1] sm:$0xff]
          %503 = vst [vmem:[#allocation2] sm:$0xff] %v502
          %v504 = vld [vmem:[%s2] sm:$0xff]
          %505 = vst [vmem:[#allocation3] sm:$0xff] %v504
        $region88: #{lstm_decoder_decode.1} parent=59 // pred_fallthru
          _
        %v506 = vld [vmem:[%s493] sm:$0xff]
        %v507 = vld [vmem:[#allocation2] sm:$0xff]
        %v508 = vld [vmem:[#allocation3] sm:$0xff]
        %v509 = vpack.c.bf16 %v506, %v506
        %v510 = vld [vmem:[%s3] sm:$0xf]
        %v511 = vld [vmem:[%s3 + $0x4] sm:$0xf]
        %v512 = vld [vmem:[%s3 + $0x8] sm:$0xf]
        %v513 = vld [vmem:[%s3 + $0xc] sm:$0xf]
        %v514 = vld [vmem:[%s3 + $0x10] sm:$0xf]
        %v515 = vld [vmem:[%s3 + $0x14] sm:$0xf]
        %v516 = vld [vmem:[%s3 + $0x18] sm:$0xf]
        %v517 = vld [vmem:[%s3 + $0x1c] sm:$0xf]
        %v518 = vld [vmem:[%s3 + $0x20] sm:$0xf]
        %v519 = vld [vmem:[%s3 + $0x24] sm:$0xf]
        %v520 = vld [vmem:[%s3 + $0x28] sm:$0xf]
        %v521 = vld [vmem:[%s3 + $0x2c] sm:$0xf]
        %v522 = vld [vmem:[%s3 + $0x30] sm:$0xf]
        %v523 = vld [vmem:[%s3 + $0x34] sm:$0xf]
        %v524 = vld [vmem:[%s3 + $0x38] sm:$0xf]
        %v525 = vld [vmem:[%s3 + $0x3c] sm:$0xf]
        %v526 = vld [vmem:[#allocation4] sm:$0x1]
        %v528 = vperm.slane %v526, 0
        %v546 = vunpack.c.l.b16 %v510
        %v547 = vunpack.c.l.b16 %v511
        %v548 = vunpack.c.l.b16 %v512
        %v549 = vunpack.c.l.b16 %v513
        %v550 = vunpack.c.l.b16 %v514
        %v551 = vunpack.c.l.b16 %v515
        %v552 = vunpack.c.l.b16 %v516
        %v553 = vunpack.c.l.b16 %v517
        %v554 = vunpack.c.l.b16 %v518
        %v555 = vunpack.c.l.b16 %v519
        %v556 = vunpack.c.l.b16 %v520
        %v557 = vunpack.c.l.b16 %v521
        %v558 = vunpack.c.l.b16 %v522
        %v559 = vunpack.c.l.b16 %v523
        %v560 = vunpack.c.l.b16 %v524
        %v561 = vunpack.c.l.b16 %v525
        %v562 = vpack.c.b16 %v547, %v546
        %v563 = vpack.c.b16 %v549, %v548
        %v564 = vpack.c.b16 %v551, %v550
        %v565 = vpack.c.b16 %v553, %v552
        %v566 = vpack.c.b16 %v555, %v554
        %v567 = vpack.c.b16 %v557, %v556
        %v568 = vpack.c.b16 %v559, %v558
        %v569 = vpack.c.b16 %v561, %v560
        %578 = vmatpush.bf16.msra.mxu0 %v569
        %579 = vmatpush.bf16.msra.mxu0 %v568
        %580 = vmatpush.bf16.msra.mxu0 %v567
        %581 = vmatpush.bf16.msra.mxu0 %v566
        %582 = vmatpush.bf16.msra.mxu0 %v565
        %583 = vmatpush.bf16.msra.mxu0 %v564
        %584 = vmatpush.bf16.msra.mxu0 %v563
        %585 = vmatpush.bf16.msra.mxu0 %v562
        %586 = vmatmul.bf16.gmra.mxu0 %v509
        %v587 = vpop.f32.mrf.mxu0
        %v588 = vadd.f32 %v528, %v587
        %v589 = vpop.f32.mrf.mxu0
        %590 = vdwg.mxu0
        %v591 = vmax.f32 %v588, 0.0
        %v592 = vpack.c.bf16 %v591, %v591
        %v593 = vld [vmem:[#allocation6] sm:$0xff]
        %v594 = vld [vmem:[#allocation6 + $0x8] sm:$0xff]
        %v595 = vld [vmem:[#allocation6 + $0x10] sm:$0xff]
        %v596 = vld [vmem:[#allocation6 + $0x18] sm:$0xff]
        %v597 = vld [vmem:[#allocation6 + $0x20] sm:$0xff]
        %v598 = vld [vmem:[#allocation6 + $0x28] sm:$0xff]
        %v599 = vld [vmem:[#allocation6 + $0x30] sm:$0xff]
        %v600 = vld [vmem:[#allocation6 + $0x38] sm:$0xff]
        %v601 = vld [vmem:[#allocation6 + $0x40] sm:$0xff]
        %v602 = vld [vmem:[#allocation6 + $0x48] sm:$0xff]
        %v603 = vld [vmem:[#allocation6 + $0x50] sm:$0xff]
        %v604 = vld [vmem:[#allocation6 + $0x58] sm:$0xff]
        %v605 = vld [vmem:[#allocation6 + $0x60] sm:$0xff]
        %v606 = vld [vmem:[#allocation6 + $0x68] sm:$0xff]
        %v607 = vld [vmem:[#allocation6 + $0x70] sm:$0xff]
        %v608 = vld [vmem:[#allocation6 + $0x78] sm:$0xff]
        %v609 = vld [vmem:[#allocation6 + $0x80] sm:$0xff]
        %v610 = vld [vmem:[#allocation6 + $0x88] sm:$0xff]
        %v611 = vld [vmem:[#allocation6 + $0x90] sm:$0xff]
        %v612 = vld [vmem:[#allocation6 + $0x98] sm:$0xff]
        %v613 = vld [vmem:[#allocation6 + $0xa0] sm:$0xff]
        %v614 = vld [vmem:[#allocation6 + $0xa8] sm:$0xff]
        %v615 = vld [vmem:[#allocation6 + $0xb0] sm:$0xff]
        %v616 = vld [vmem:[#allocation6 + $0xb8] sm:$0xff]
        %v617 = vld [vmem:[#allocation6 + $0xc0] sm:$0xff]
        %v618 = vld [vmem:[#allocation6 + $0xc8] sm:$0xff]
        %v619 = vld [vmem:[#allocation6 + $0xd0] sm:$0xff]
        %v620 = vld [vmem:[#allocation6 + $0xd8] sm:$0xff]
        %v621 = vld [vmem:[#allocation6 + $0xe0] sm:$0xff]
        %v622 = vld [vmem:[#allocation6 + $0xe8] sm:$0xff]
        %v623 = vld [vmem:[#allocation6 + $0xf0] sm:$0xff]
        %v624 = vld [vmem:[#allocation6 + $0xf8] sm:$0xff]
        %v625 = vpack.c.bf16 %v507, %v507
        %v626 = vld [vmem:[#allocation8] sm:$0xff]
        %v627 = vld [vmem:[#allocation8 + $0x8] sm:$0xff]
        %v628 = vld [vmem:[#allocation8 + $0x10] sm:$0xff]
        %v629 = vld [vmem:[#allocation8 + $0x18] sm:$0xff]
        %v630 = vld [vmem:[#allocation8 + $0x20] sm:$0xff]
        %v631 = vld [vmem:[#allocation8 + $0x28] sm:$0xff]
        %v632 = vld [vmem:[#allocation8 + $0x30] sm:$0xff]
        %v633 = vld [vmem:[#allocation8 + $0x38] sm:$0xff]
        %v634 = vld [vmem:[#allocation8 + $0x40] sm:$0xff]
        %v635 = vld [vmem:[#allocation8 + $0x48] sm:$0xff]
        %v636 = vld [vmem:[#allocation8 + $0x50] sm:$0xff]
        %v637 = vld [vmem:[#allocation8 + $0x58] sm:$0xff]
        %v638 = vld [vmem:[#allocation8 + $0x60] sm:$0xff]
        %v639 = vld [vmem:[#allocation8 + $0x68] sm:$0xff]
        %v640 = vld [vmem:[#allocation8 + $0x70] sm:$0xff]
        %v641 = vld [vmem:[#allocation8 + $0x78] sm:$0xff]
        %v642 = vld [vmem:[#allocation8 + $0x80] sm:$0xff]
        %v643 = vld [vmem:[#allocation8 + $0x88] sm:$0xff]
        %v644 = vld [vmem:[#allocation8 + $0x90] sm:$0xff]
        %v645 = vld [vmem:[#allocation8 + $0x98] sm:$0xff]
        %v646 = vld [vmem:[#allocation8 + $0xa0] sm:$0xff]
        %v647 = vld [vmem:[#allocation8 + $0xa8] sm:$0xff]
        %v648 = vld [vmem:[#allocation8 + $0xb0] sm:$0xff]
        %v649 = vld [vmem:[#allocation8 + $0xb8] sm:$0xff]
        %v650 = vld [vmem:[#allocation8 + $0xc0] sm:$0xff]
        %v651 = vld [vmem:[#allocation8 + $0xc8] sm:$0xff]
        %v652 = vld [vmem:[#allocation8 + $0xd0] sm:$0xff]
        %v653 = vld [vmem:[#allocation8 + $0xd8] sm:$0xff]
        %v654 = vld [vmem:[#allocation8 + $0xe0] sm:$0xff]
        %v655 = vld [vmem:[#allocation8 + $0xe8] sm:$0xff]
        %v656 = vld [vmem:[#allocation8 + $0xf0] sm:$0xff]
        %v657 = vld [vmem:[#allocation8 + $0xf8] sm:$0xff]
        %v690 = vunpack.c.l.b16 %v626
        %v691 = vunpack.c.h.b16 %v626
        %v692 = vunpack.c.l.b16 %v627
        %v693 = vunpack.c.h.b16 %v627
        %v694 = vunpack.c.l.b16 %v628
        %v695 = vunpack.c.h.b16 %v628
        %v696 = vunpack.c.l.b16 %v629
        %v697 = vunpack.c.h.b16 %v629
        %v698 = vunpack.c.l.b16 %v630
        %v699 = vunpack.c.h.b16 %v630
        %v700 = vunpack.c.l.b16 %v631
        %v701 = vunpack.c.h.b16 %v631
        %v702 = vunpack.c.l.b16 %v632
        %v703 = vunpack.c.h.b16 %v632
        %v704 = vunpack.c.l.b16 %v633
        %v705 = vunpack.c.h.b16 %v633
        %v706 = vunpack.c.l.b16 %v634
        %v707 = vunpack.c.h.b16 %v634
        %v708 = vunpack.c.l.b16 %v635
        %v709 = vunpack.c.h.b16 %v635
        %v710 = vunpack.c.l.b16 %v636
        %v711 = vunpack.c.h.b16 %v636
        %v712 = vunpack.c.l.b16 %v637
        %v713 = vunpack.c.h.b16 %v637
        %v714 = vunpack.c.l.b16 %v638
        %v715 = vunpack.c.h.b16 %v638
        %v716 = vunpack.c.l.b16 %v639
        %v717 = vunpack.c.h.b16 %v639
        %v718 = vunpack.c.l.b16 %v640
        %v719 = vunpack.c.h.b16 %v640
        %v720 = vunpack.c.l.b16 %v641
        %v721 = vunpack.c.h.b16 %v641
        %v722 = vunpack.c.l.b16 %v642
        %v723 = vunpack.c.h.b16 %v642
        %v724 = vunpack.c.l.b16 %v643
        %v725 = vunpack.c.h.b16 %v643
        %v726 = vunpack.c.l.b16 %v644
        %v727 = vunpack.c.h.b16 %v644
        %v728 = vunpack.c.l.b16 %v645
        %v729 = vunpack.c.h.b16 %v645
        %v730 = vunpack.c.l.b16 %v646
        %v731 = vunpack.c.h.b16 %v646
        %v732 = vunpack.c.l.b16 %v647
        %v733 = vunpack.c.h.b16 %v647
        %v734 = vunpack.c.l.b16 %v648
        %v735 = vunpack.c.h.b16 %v648
        %v736 = vunpack.c.l.b16 %v649
        %v737 = vunpack.c.h.b16 %v649
        %v738 = vunpack.c.l.b16 %v650
        %v739 = vunpack.c.h.b16 %v650
        %v740 = vunpack.c.l.b16 %v651
        %v741 = vunpack.c.h.b16 %v651
        %v742 = vunpack.c.l.b16 %v652
        %v743 = vunpack.c.h.b16 %v652
        %v744 = vunpack.c.l.b16 %v653
        %v745 = vunpack.c.h.b16 %v653
        %v746 = vunpack.c.l.b16 %v654
        %v747 = vunpack.c.h.b16 %v654
        %v748 = vunpack.c.l.b16 %v655
        %v749 = vunpack.c.h.b16 %v655
        %v750 = vunpack.c.l.b16 %v656
        %v751 = vunpack.c.h.b16 %v656
        %v752 = vunpack.c.l.b16 %v657
        %v753 = vunpack.c.h.b16 %v657
        %v754 = vpack.c.b16 %v694, %v690
        %v755 = vpack.c.b16 %v695, %v691
        %v756 = vpack.c.b16 %v696, %v692
        %v757 = vpack.c.b16 %v697, %v693
        %v758 = vpack.c.b16 %v702, %v698
        %v759 = vpack.c.b16 %v703, %v699
        %v760 = vpack.c.b16 %v704, %v700
        %v761 = vpack.c.b16 %v705, %v701
        %v762 = vpack.c.b16 %v710, %v706
        %v763 = vpack.c.b16 %v711, %v707
        %v764 = vpack.c.b16 %v712, %v708
        %v765 = vpack.c.b16 %v713, %v709
        %v766 = vpack.c.b16 %v718, %v714
        %v767 = vpack.c.b16 %v719, %v715
        %v768 = vpack.c.b16 %v720, %v716
        %v769 = vpack.c.b16 %v721, %v717
        %v770 = vpack.c.b16 %v726, %v722
        %v771 = vpack.c.b16 %v727, %v723
        %v772 = vpack.c.b16 %v728, %v724
        %v773 = vpack.c.b16 %v729, %v725
        %v774 = vpack.c.b16 %v734, %v730
        %v775 = vpack.c.b16 %v735, %v731
        %v776 = vpack.c.b16 %v736, %v732
        %v777 = vpack.c.b16 %v737, %v733
        %v778 = vpack.c.b16 %v742, %v738
        %v779 = vpack.c.b16 %v743, %v739
        %v780 = vpack.c.b16 %v744, %v740
        %v781 = vpack.c.b16 %v745, %v741
        %v782 = vpack.c.b16 %v750, %v746
        %v783 = vpack.c.b16 %v751, %v747
        %v784 = vpack.c.b16 %v752, %v748
        %v785 = vpack.c.b16 %v753, %v749
        %818 = vmatpush.bf16.msra.mxu0 %v782
        %819 = vmatpush.bf16.msra.mxu0 %v778
        %820 = vmatpush.bf16.msra.mxu0 %v774
        %821 = vmatpush.bf16.msra.mxu0 %v770
        %822 = vmatpush.bf16.msra.mxu0 %v766
        %823 = vmatpush.bf16.msra.mxu0 %v762
        %824 = vmatpush.bf16.msra.mxu0 %v758
        %825 = vmatpush.bf16.msra.mxu0 %v754
        %826 = vmatmul.bf16.gmra.mxu0 %v625
        %v827 = vpop.f32.mrf.mxu0
        %v828 = vadd.f32 0.0, %v827
        %v829 = vpop.f32.mrf.mxu0
        %830 = vdwg.mxu0
        %831 = vmatpush.bf16.msra.mxu0 %v783
        %832 = vmatpush.bf16.msra.mxu0 %v779
        %833 = vmatpush.bf16.msra.mxu0 %v775
        %834 = vmatpush.bf16.msra.mxu0 %v771
        %835 = vmatpush.bf16.msra.mxu0 %v767
        %836 = vmatpush.bf16.msra.mxu0 %v763
        %837 = vmatpush.bf16.msra.mxu0 %v759
        %838 = vmatpush.bf16.msra.mxu0 %v755
        %839 = vmatmul.bf16.gmra.mxu0 %v625
        %v840 = vpop.f32.mrf.mxu0
        %v841 = vadd.f32 0.0, %v840
        %v842 = vpop.f32.mrf.mxu0
        %843 = vdwg.mxu0
        %844 = vmatpush.bf16.msra.mxu0 %v784
        %845 = vmatpush.bf16.msra.mxu0 %v780
        %846 = vmatpush.bf16.msra.mxu0 %v776
        %847 = vmatpush.bf16.msra.mxu0 %v772
        %848 = vmatpush.bf16.msra.mxu0 %v768
        %849 = vmatpush.bf16.msra.mxu0 %v764
        %850 = vmatpush.bf16.msra.mxu0 %v760
        %851 = vmatpush.bf16.msra.mxu0 %v756
        %852 = vmatmul.bf16.gmra.mxu0 %v625
        %v853 = vpop.f32.mrf.mxu0
        %v854 = vadd.f32 0.0, %v853
        %v855 = vpop.f32.mrf.mxu0
        %856 = vdwg.mxu0
        %857 = vmatpush.bf16.msra.mxu0 %v785
        %858 = vmatpush.bf16.msra.mxu0 %v781
        %859 = vmatpush.bf16.msra.mxu0 %v777
        %860 = vmatpush.bf16.msra.mxu0 %v773
        %861 = vmatpush.bf16.msra.mxu0 %v769
        %862 = vmatpush.bf16.msra.mxu0 %v765
        %863 = vmatpush.bf16.msra.mxu0 %v761
        %864 = vmatpush.bf16.msra.mxu0 %v757
        %865 = vmatmul.bf16.gmra.mxu0 %v625
        %v866 = vpop.f32.mrf.mxu0
        %v867 = vadd.f32 0.0, %v866
        %v868 = vpop.f32.mrf.mxu0
        %869 = vdwg.mxu0
        %v902 = vunpack.c.l.b16 %v593
        %v903 = vunpack.c.h.b16 %v593
        %v904 = vunpack.c.l.b16 %v594
        %v905 = vunpack.c.h.b16 %v594
        %v906 = vunpack.c.l.b16 %v595
        %v907 = vunpack.c.h.b16 %v595
        %v908 = vunpack.c.l.b16 %v596
        %v909 = vunpack.c.h.b16 %v596
        %v910 = vunpack.c.l.b16 %v597
        %v911 = vunpack.c.h.b16 %v597
        %v912 = vunpack.c.l.b16 %v598
        %v913 = vunpack.c.h.b16 %v598
        %v914 = vunpack.c.l.b16 %v599
        %v915 = vunpack.c.h.b16 %v599
        %v916 = vunpack.c.l.b16 %v600
        %v917 = vunpack.c.h.b16 %v600
        %v918 = vunpack.c.l.b16 %v601
        %v919 = vunpack.c.h.b16 %v601
        %v920 = vunpack.c.l.b16 %v602
        %v921 = vunpack.c.h.b16 %v602
        %v922 = vunpack.c.l.b16 %v603
        %v923 = vunpack.c.h.b16 %v603
        %v924 = vunpack.c.l.b16 %v604
        %v925 = vunpack.c.h.b16 %v604
        %v926 = vunpack.c.l.b16 %v605
        %v927 = vunpack.c.h.b16 %v605
        %v928 = vunpack.c.l.b16 %v606
        %v929 = vunpack.c.h.b16 %v606
        %v930 = vunpack.c.l.b16 %v607
        %v931 = vunpack.c.h.b16 %v607
        %v932 = vunpack.c.l.b16 %v608
        %v933 = vunpack.c.h.b16 %v608
        %v934 = vunpack.c.l.b16 %v609
        %v935 = vunpack.c.h.b16 %v609
        %v936 = vunpack.c.l.b16 %v610
        %v937 = vunpack.c.h.b16 %v610
        %v938 = vunpack.c.l.b16 %v611
        %v939 = vunpack.c.h.b16 %v611
        %v940 = vunpack.c.l.b16 %v612
        %v941 = vunpack.c.h.b16 %v612
        %v942 = vunpack.c.l.b16 %v613
        %v943 = vunpack.c.h.b16 %v613
        %v944 = vunpack.c.l.b16 %v614
        %v945 = vunpack.c.h.b16 %v614
        %v946 = vunpack.c.l.b16 %v615
        %v947 = vunpack.c.h.b16 %v615
        %v948 = vunpack.c.l.b16 %v616
        %v949 = vunpack.c.h.b16 %v616
        %v950 = vunpack.c.l.b16 %v617
        %v951 = vunpack.c.h.b16 %v617
        %v952 = vunpack.c.l.b16 %v618
        %v953 = vunpack.c.h.b16 %v618
        %v954 = vunpack.c.l.b16 %v619
        %v955 = vunpack.c.h.b16 %v619
        %v956 = vunpack.c.l.b16 %v620
        %v957 = vunpack.c.h.b16 %v620
        %v958 = vunpack.c.l.b16 %v621
        %v959 = vunpack.c.h.b16 %v621
        %v960 = vunpack.c.l.b16 %v622
        %v961 = vunpack.c.h.b16 %v622
        %v962 = vunpack.c.l.b16 %v623
        %v963 = vunpack.c.h.b16 %v623
        %v964 = vunpack.c.l.b16 %v624
        %v965 = vunpack.c.h.b16 %v624
        %v966 = vpack.c.b16 %v906, %v902
        %v967 = vpack.c.b16 %v907, %v903
        %v968 = vpack.c.b16 %v908, %v904
        %v969 = vpack.c.b16 %v909, %v905
        %v970 = vpack.c.b16 %v914, %v910
        %v971 = vpack.c.b16 %v915, %v911
        %v972 = vpack.c.b16 %v916, %v912
        %v973 = vpack.c.b16 %v917, %v913
        %v974 = vpack.c.b16 %v922, %v918
        %v975 = vpack.c.b16 %v923, %v919
        %v976 = vpack.c.b16 %v924, %v920
        %v977 = vpack.c.b16 %v925, %v921
        %v978 = vpack.c.b16 %v930, %v926
        %v979 = vpack.c.b16 %v931, %v927
        %v980 = vpack.c.b16 %v932, %v928
        %v981 = vpack.c.b16 %v933, %v929
        %v982 = vpack.c.b16 %v938, %v934
        %v983 = vpack.c.b16 %v939, %v935
        %v984 = vpack.c.b16 %v940, %v936
        %v985 = vpack.c.b16 %v941, %v937
        %v986 = vpack.c.b16 %v946, %v942
        %v987 = vpack.c.b16 %v947, %v943
        %v988 = vpack.c.b16 %v948, %v944
        %v989 = vpack.c.b16 %v949, %v945
        %v990 = vpack.c.b16 %v954, %v950
        %v991 = vpack.c.b16 %v955, %v951
        %v992 = vpack.c.b16 %v956, %v952
        %v993 = vpack.c.b16 %v957, %v953
        %v994 = vpack.c.b16 %v962, %v958
        %v995 = vpack.c.b16 %v963, %v959
        %v996 = vpack.c.b16 %v964, %v960
        %v997 = vpack.c.b16 %v965, %v961
        %1030 = vmatpush.bf16.msra.mxu0 %v994
        %1031 = vmatpush.bf16.msra.mxu0 %v990
        %1032 = vmatpush.bf16.msra.mxu0 %v986
        %1033 = vmatpush.bf16.msra.mxu0 %v982
        %1034 = vmatpush.bf16.msra.mxu0 %v978
        %1035 = vmatpush.bf16.msra.mxu0 %v974
        %1036 = vmatpush.bf16.msra.mxu0 %v970
        %1037 = vmatpush.bf16.msra.mxu0 %v966
        %1038 = vmatmul.bf16.gmra.mxu0 %v592
        %v1039 = vpop.f32.mrf.mxu0
        %v1040 = vadd.f32 %v828, %v1039
        %v1041 = vpop.f32.mrf.mxu0
        %1042 = vdwg.mxu0
        %1043 = vmatpush.bf16.msra.mxu0 %v995
        %1044 = vmatpush.bf16.msra.mxu0 %v991
        %1045 = vmatpush.bf16.msra.mxu0 %v987
        %1046 = vmatpush.bf16.msra.mxu0 %v983
        %1047 = vmatpush.bf16.msra.mxu0 %v979
        %1048 = vmatpush.bf16.msra.mxu0 %v975
        %1049 = vmatpush.bf16.msra.mxu0 %v971
        %1050 = vmatpush.bf16.msra.mxu0 %v967
        %1051 = vmatmul.bf16.gmra.mxu0 %v592
        %v1052 = vpop.f32.mrf.mxu0
        %v1053 = vadd.f32 %v841, %v1052
        %v1054 = vpop.f32.mrf.mxu0
        %1055 = vdwg.mxu0
        %1056 = vmatpush.bf16.msra.mxu0 %v996
        %1057 = vmatpush.bf16.msra.mxu0 %v992
        %1058 = vmatpush.bf16.msra.mxu0 %v988
        %1059 = vmatpush.bf16.msra.mxu0 %v984
        %1060 = vmatpush.bf16.msra.mxu0 %v980
        %1061 = vmatpush.bf16.msra.mxu0 %v976
        %1062 = vmatpush.bf16.msra.mxu0 %v972
        %1063 = vmatpush.bf16.msra.mxu0 %v968
        %1064 = vmatmul.bf16.gmra.mxu0 %v592
        %v1065 = vpop.f32.mrf.mxu0
        %v1066 = vadd.f32 %v854, %v1065
        %v1067 = vpop.f32.mrf.mxu0
        %1068 = vdwg.mxu0
        %1069 = vmatpush.bf16.msra.mxu0 %v997
        %1070 = vmatpush.bf16.msra.mxu0 %v993
        %1071 = vmatpush.bf16.msra.mxu0 %v989
        %1072 = vmatpush.bf16.msra.mxu0 %v985
        %1073 = vmatpush.bf16.msra.mxu0 %v981
        %1074 = vmatpush.bf16.msra.mxu0 %v977
        %1075 = vmatpush.bf16.msra.mxu0 %v973
        %1076 = vmatpush.bf16.msra.mxu0 %v969
        %1077 = vmatmul.bf16.gmra.mxu0 %v592
        %v1078 = vpop.f32.mrf.mxu0
        %v1079 = vadd.f32 %v867, %v1078
        %v1080 = vpop.f32.mrf.mxu0
        %1081 = vdwg.mxu0
        %v1082 = vld [vmem:[#allocation9] sm:$0xf]
        %v1084 = vperm.slane %v1082, 0
        %v1085 = vperm.slane %v1082, 1
        %v1086 = vperm.slane %v1082, 2
        %v1087 = vperm.slane %v1082, 3
        %v1092 = vadd.f32 %v1040, %v1084
        %v1093 = vadd.f32 %v1053, %v1085
        %v1094 = vadd.f32 %v1066, %v1086
        %v1095 = vadd.f32 %v1079, %v1087
        %v1096 = vxor.u32 %v1092, 2147483648
        %v1097 = vxor.u32 %v1093, 2147483648
        %v1098 = vxor.u32 %v1094, 2147483648
        %v1099 = vmul.f32 %v1096, 1.442695
        %v1100 = vpow.pop %v1099
        %v1101 = vmul.f32 %v1097, 1.442695
        %v1102 = vpow.pop %v1101
        %v1103 = vmul.f32 %v1098, 1.442695
        %v1104 = vpow.pop %v1103
        %v1105 = vadd.f32 %v1100, 1.0
        %v1106 = vadd.f32 %v1102, 1.0
        %v1107 = vadd.f32 %v1104, 1.0
        %v1108 = vrcp.pop %v1105
        %v1109 = vmul.f32 %v1105, %v1108
        %v1110 = vsub.f32 1.0, %v1109
        %v1111 = vmul.f32 %v1108, %v1110
        %v1112 = vadd.f32 %v1108, %v1111
        %vm1113 = vweird.f32 %v1105
        %vm1114 = vweird.f32 %v1108
        %vm1115 = vmor %vm1113, %vm1114
        %v1116 = vsel %vm1115, %v1108, %v1112
        %v1117 = vand.u32 2147483647, %v1105
        %vm1118 = vcmp.eq.f32.partialorder %v1117, 8.507059e+37
        %v1119 = vand.u32 %v1105, 2147483648
        %v1120 = vor.u32 1.1754944e-38, %v1119
        %v1121 = vsel %vm1118, %v1120, %v1116
        %v1122 = vmul.f32 1.0, %v1121
        %v1123 = vrcp.pop %v1106
        %v1124 = vmul.f32 %v1106, %v1123
        %v1125 = vsub.f32 1.0, %v1124
        %v1126 = vmul.f32 %v1123, %v1125
        %v1127 = vadd.f32 %v1123, %v1126
        %vm1128 = vweird.f32 %v1106
        %vm1129 = vweird.f32 %v1123
        %vm1130 = vmor %vm1128, %vm1129
        %v1131 = vsel %vm1130, %v1123, %v1127
        %v1132 = vand.u32 2147483647, %v1106
        %vm1133 = vcmp.eq.f32.partialorder %v1132, 8.507059e+37
        %v1134 = vand.u32 %v1106, 2147483648
        %v1135 = vor.u32 1.1754944e-38, %v1134
        %v1136 = vsel %vm1133, %v1135, %v1131
        %v1137 = vmul.f32 1.0, %v1136
        %v1138 = vrcp.pop %v1107
        %v1139 = vmul.f32 %v1107, %v1138
        %v1140 = vsub.f32 1.0, %v1139
        %v1141 = vmul.f32 %v1138, %v1140
        %v1142 = vadd.f32 %v1138, %v1141
        %vm1143 = vweird.f32 %v1107
        %vm1144 = vweird.f32 %v1138
        %vm1145 = vmor %vm1143, %vm1144
        %v1146 = vsel %vm1145, %v1138, %v1142
        %v1147 = vand.u32 2147483647, %v1107
        %vm1148 = vcmp.eq.f32.partialorder %v1147, 8.507059e+37
        %v1149 = vand.u32 %v1107, 2147483648
        %v1150 = vor.u32 1.1754944e-38, %v1149
        %v1151 = vsel %vm1148, %v1150, %v1146
        %v1152 = vmul.f32 1.0, %v1151
        %v1153 = vtanh.pop %v1095
        %v1154 = vmul.f32 %v1137, %v508
        %v1155 = vmul.f32 %v1122, %v1153
        %v1156 = vadd.f32 %v1154, %v1155
        %v1157 = vtanh.pop %v1156
        %v1158 = vmul.f32 %v1152, %v1157
        %v1159 = vpack.c.bf16 %v1158, %v1158
        %v1160 = vld [vmem:[#allocation11] sm:$0xf]
        %v1161 = vld [vmem:[#allocation11 + $0x4] sm:$0xf]
        %v1162 = vld [vmem:[#allocation11 + $0x8] sm:$0xf]
        %v1163 = vld [vmem:[#allocation11 + $0xc] sm:$0xf]
        %v1164 = vld [vmem:[#allocation11 + $0x10] sm:$0xf]
        %v1165 = vld [vmem:[#allocation11 + $0x14] sm:$0xf]
        %v1166 = vld [vmem:[#allocation11 + $0x18] sm:$0xf]
        %v1167 = vld [vmem:[#allocation11 + $0x1c] sm:$0xf]
        %v1168 = vld [vmem:[#allocation11 + $0x20] sm:$0xf]
        %v1169 = vld [vmem:[#allocation11 + $0x24] sm:$0xf]
        %v1170 = vld [vmem:[#allocation11 + $0x28] sm:$0xf]
        %v1171 = vld [vmem:[#allocation11 + $0x2c] sm:$0xf]
        %v1172 = vld [vmem:[#allocation11 + $0x30] sm:$0xf]
        %v1173 = vld [vmem:[#allocation11 + $0x34] sm:$0xf]
        %v1174 = vld [vmem:[#allocation11 + $0x38] sm:$0xf]
        %v1175 = vld [vmem:[#allocation11 + $0x3c] sm:$0xf]
        %v1176 = vld [vmem:[#allocation12] sm:$0x1]
        %v1178 = vperm.slane %v1176, 0
        %v1196 = vunpack.c.l.b16 %v1160
        %v1197 = vunpack.c.l.b16 %v1161
        %v1198 = vunpack.c.l.b16 %v1162
        %v1199 = vunpack.c.l.b16 %v1163
        %v1200 = vunpack.c.l.b16 %v1164
        %v1201 = vunpack.c.l.b16 %v1165
        %v1202 = vunpack.c.l.b16 %v1166
        %v1203 = vunpack.c.l.b16 %v1167
        %v1204 = vunpack.c.l.b16 %v1168
        %v1205 = vunpack.c.l.b16 %v1169
        %v1206 = vunpack.c.l.b16 %v1170
        %v1207 = vunpack.c.l.b16 %v1171
        %v1208 = vunpack.c.l.b16 %v1172
        %v1209 = vunpack.c.l.b16 %v1173
        %v1210 = vunpack.c.l.b16 %v1174
        %v1211 = vunpack.c.l.b16 %v1175
        %v1212 = vpack.c.b16 %v1197, %v1196
        %v1213 = vpack.c.b16 %v1199, %v1198
        %v1214 = vpack.c.b16 %v1201, %v1200
        %v1215 = vpack.c.b16 %v1203, %v1202
        %v1216 = vpack.c.b16 %v1205, %v1204
        %v1217 = vpack.c.b16 %v1207, %v1206
        %v1218 = vpack.c.b16 %v1209, %v1208
        %v1219 = vpack.c.b16 %v1211, %v1210
        %1228 = vmatpush.bf16.msra.mxu0 %v1219
        %1229 = vmatpush.bf16.msra.mxu0 %v1218
        %1230 = vmatpush.bf16.msra.mxu0 %v1217
        %1231 = vmatpush.bf16.msra.mxu0 %v1216
        %1232 = vmatpush.bf16.msra.mxu0 %v1215
        %1233 = vmatpush.bf16.msra.mxu0 %v1214
        %1234 = vmatpush.bf16.msra.mxu0 %v1213
        %1235 = vmatpush.bf16.msra.mxu0 %v1212
        %1236 = vmatmul.bf16.gmra.mxu0 %v1159
        %v1237 = vpop.f32.mrf.mxu0
        %v1238 = vadd.f32 %v1178, %v1237
        %v1239 = vpop.f32.mrf.mxu0
        %1240 = vdwg.mxu0
        %1241 = vst [vmem:[%s497] sm:$0xff] %v1238
        %1242 = vst [vmem:[#allocation2] sm:$0xff] %v1158
        %1243 = vst [vmem:[#allocation3] sm:$0xff] %v1156
        %1244 = vst [vmem:[%s11] sm:$0xff] %v1158
        %1245 = vst [vmem:[%s12] sm:$0xff] %v1156
        %p1246 = scmp.lt.s32.totalorder %s28, 3
        %s1247 = scalar_select %p1246, %s28, 3
        %s1248 = smul.addr %s1247, 8
        %s1249 = scalar_lea.vmem %s10, %s1248
        // Predicated region
        $region89: #{lstm_decoder_decode.1} parent=59 // pred_check
          %p1250 = pneg %p261
        $region90: #{lstm_decoder_decode.1} parent=59 // pred_check_branch
          %1252 = sbr.rel (%p1250) target = $region92
        $region91: #{lstm_decoder_decode.1} parent=59 // pred_region
          _
        $region92: #{lstm_decoder_decode.1} parent=59 // pred_fallthru
          _
        // Predicated region
        $region93: #{lstm_decoder_decode.1} parent=59 // pred_check
          %p1253 = pneg %p282
        $region94: #{lstm_decoder_decode.1} parent=59 // pred_check_branch
          %1255 = sbr.rel (%p1253) target = $region96
        $region95: #{lstm_decoder_decode.1} parent=59 // pred_region
          _
        $region96: #{lstm_decoder_decode.1} parent=59 // pred_fallthru
          _
        // Predicated region
        $region97: #{lstm_decoder_decode.1} parent=59 // pred_check
          %p1256 = pneg %p303
        $region98: #{lstm_decoder_decode.1} parent=59 // pred_check_branch
          %1258 = sbr.rel (%p1256) target = $region100
        $region99: #{lstm_decoder_decode.1} parent=59 // pred_region
          _
        $region100: #{lstm_decoder_decode.1} parent=59 // pred_fallthru
          _
        // Predicated region
        $region101: #{lstm_decoder_decode.1} parent=59 // pred_check
          %p1259 = pneg %p282
        $region102: #{lstm_decoder_decode.1} parent=59 // pred_check_branch
          %1261 = sbr.rel (%p1259) target = $region104
        $region103: #{lstm_decoder_decode.1} parent=59 // pred_region
          _
        $region104: #{lstm_decoder_decode.1} parent=59 // pred_fallthru
          _
        // Predicated region
        $region105: #{lstm_decoder_decode.1} parent=59 // pred_check
          %p1262 = pneg %p303
        $region106: #{lstm_decoder_decode.1} parent=59 // pred_check_branch
          %1264 = sbr.rel (%p1262) target = $region108
        $region107: #{lstm_decoder_decode.1} parent=59 // pred_region
          _
        $region108: #{lstm_decoder_decode.1} parent=59 // pred_fallthru
          _
      $region60: #{lstm_decoder_decode.1} parent=5 // pred_fallthru
        _
      %p1265 = scmp.le.s32.totalorder 2, %s23
      // Predicated region
      $region109: #{lstm_decoder_decode.1} parent=5 // pred_check
        %p1266 = pneg %p1265
      $region110: #{lstm_decoder_decode.1} parent=5 // pred_check_branch
        %1268 = sbr.rel (%p1266) target = $region112
      $region111: #{lstm_decoder_decode.1} parent=5 // pred_region
        %s1269 = ssub.s32 %s23, 2
        // Predicated region
        $region113: #{lstm_decoder_decode.1} parent=111 // pred_check
          %p1270 = pneg %p267
        $region114: #{lstm_decoder_decode.1} parent=111 // pred_check_branch
          %1272 = sbr.rel (%p1270) target = $region116
        $region115: #{lstm_decoder_decode.1} parent=111 // pred_region
          %p1273 = scmp.lt.s32.totalorder %s29, 3
          %s1274 = scalar_select %p1273, %s29, 3
          %s1275 = smul.addr %s1274, 8
          %s1276 = scalar_lea.vmem %s10, %s1275
        $region116: #{lstm_decoder_decode.1} parent=111 // pred_fallthru
          _
      $region112: #{lstm_decoder_decode.1} parent=5 // pred_fallthru
        _
    $region6: #{lstm_decoder_decode.1} parent=1 // loop_footer
      %s27 = sadd.s32 1, %s23
    $region7: #{lstm_decoder_decode.1} parent=1 // loop_footer_branch
      %22 = sbr.rel target = $region3
    $region8: #{lstm_decoder_decode.1} parent=1 // loop_exit
      _
    %1277 = vsyncpa [#allocation5], 1
    %s1278 = scalar_lea.sflag [#allocation5], 1
    %1279 = vsyncpa %s1278, 1
    %1280 = vsyncpa [#allocation7], 1
    %1281 = vsyncpa [#allocation10], 1
    %1282 = vsyncpa [#allocation13], 1

</llo_original>
